<compile_context>
chip_gen: v5e
topology: v5e:2x2
jax: 0.10.0
libtpu: 0.0.40
codegen_flags: <defaults>
</compile_context>

<pallas_src>
import functools

import jax
import jax.numpy as jnp
from jax import lax
from jax.experimental import pallas as pl
from jax.experimental.pallas import tpu as pltpu


_VMEM_LIMIT_BYTES = 48 * 1024 * 1024  # safe on v5e/v6e (128 MiB) and v7x (64 MiB)


# ---------------------------------------------------------------------------
# Fused GEMM + BN-affine + (gate, residual, ReLU) kernel
# ---------------------------------------------------------------------------
def _gemm_bn_act_kernel(*refs, relu, has_gate, has_res):
    o_ref = refs[-1]
    x_ref, w_ref, s_ref, b_ref = refs[:4]
    nxt = 4
    g_ref = None
    r_ref = None
    if has_gate:
        g_ref = refs[nxt]
        nxt += 1
    if has_res:
        r_ref = refs[nxt]
        nxt += 1

    x = x_ref[0].astype(jnp.float32)                       # (K, T)
    if has_gate:
        x = x * g_ref[0].astype(jnp.float32)               # (K, 1) bcast over lanes
    y = jnp.dot(w_ref[...].astype(jnp.float32), x,
                preferred_element_type=jnp.float32)        # (Cout, T) on the MXU
    y = y * s_ref[...] + b_ref[...]                        # folded BN affine
    if has_res:
        y = y + r_ref[0].astype(jnp.float32)
    if relu:
        y = jnp.maximum(y, 0.0)
    o_ref[0] = y.astype(o_ref.dtype)


def _pick_spatial_tile(hw, per_lane_bytes, budget_bytes=10 * 1024 * 1024):
    """Largest lane-dense tile (multiple of 128 dividing hw) within the budget."""
    max_tile = max(128, budget_bytes // max(per_lane_bytes, 1))
    if hw <= max_tile:
        return hw
    best = 0
    t = 128
    while t <= max_tile:
        if hw % t == 0:
            best = t
        t += 128
    return best if best else hw


def _gemm_bn_act(x_nkhw, w, scale, bias, *, relu, gate=None, residual=None):
    """y[n] = act(W @ (x[n] * gate[n]) * scale + bias + residual[n]), spatially tiled."""
    N, K, HW = x_nkhw.shape
    Cout = w.shape[0]
    per_lane = (K + 2 * Cout) * 4                     # f32 in + out (+ residual)
    T = _pick_spatial_tile(HW, per_lane)
    grid = (N, HW // T)

    inputs = [x_nkhw, w, scale.reshape(Cout, 1), bias.reshape(Cout, 1)]
    in_specs = [
        pl.BlockSpec((1, K, T), lambda n, t: (n, 0, t)),
        pl.BlockSpec((Cout, K), lambda n, t: (0, 0)),
        pl.BlockSpec((Cout, 1), lambda n, t: (0, 0)),
        pl.BlockSpec((Cout, 1), lambda n, t: (0, 0)),
    ]
    if gate is not None:                              # (N, K, 1) per-channel gate
        inputs.append(gate)
        in_specs.append(pl.BlockSpec((1, K, 1), lambda n, t: (n, 0, 0)))
    if residual is not None:                          # (N, Cout, HW)
        inputs.append(residual)
        in_specs.append(pl.BlockSpec((1, Cout, T), lambda n, t: (n, 0, t)))

    kernel = functools.partial(_gemm_bn_act_kernel, relu=relu,
                               has_gate=gate is not None,
                               has_res=residual is not None)
    return pl.pallas_call(
        kernel,
        out_shape=jax.ShapeDtypeStruct((N, Cout, HW), x_nkhw.dtype),
        grid_spec=pltpu.PrefetchScalarGridSpec(
            num_scalar_prefetch=0,
            grid=grid,
            in_specs=in_specs,
            out_specs=pl.BlockSpec((1, Cout, T), lambda n, t: (n, 0, t)),
        ),
        compiler_params=pltpu.CompilerParams(
            dimension_semantics=("parallel", "parallel"),
            vmem_limit_bytes=_VMEM_LIMIT_BYTES),
    )(*inputs)


# ---------------------------------------------------------------------------
# Gate generator kernel: global-avg-pool -> 1x1 MLP -> softmax (per image)
# ---------------------------------------------------------------------------
def _gate_kernel(g_ref, w1_ref, b1_ref, w2_ref, b2_ref, o_ref, *, inv_hw):
    g = g_ref[0].astype(jnp.float32)                       # (Cmid, HW)
    pooled = jnp.sum(g, axis=1, keepdims=True) * inv_hw    # (Cmid, 1)  global avg pool
    h = jnp.dot(w1_ref[...], pooled,
                preferred_element_type=jnp.float32) + b1_ref[...]
    h = jnp.maximum(h, 0.0)
    z = jnp.dot(w2_ref[...], h,
                preferred_element_type=jnp.float32) + b2_ref[...]
    z = z - jnp.max(z, axis=0, keepdims=True)              # softmax over channels
    e = jnp.exp(z)
    o_ref[0] = (e / jnp.sum(e, axis=0, keepdims=True)).astype(o_ref.dtype)


def gate_generator(gates_nchw, w1, b1, w2, b2):
    N, Cmid, H, W = gates_nchw.shape
    HW = H * W
    hid = w1.shape[0]
    kernel = functools.partial(_gate_kernel, inv_hw=1.0 / HW)
    out = pl.pallas_call(
        kernel,
        out_shape=jax.ShapeDtypeStruct((N, Cmid, 1), jnp.float32),
        grid_spec=pltpu.PrefetchScalarGridSpec(
            num_scalar_prefetch=0,
            grid=(N,),
            in_specs=[
                pl.BlockSpec((1, Cmid, HW), lambda n: (n, 0, 0)),
                pl.BlockSpec((hid, Cmid), lambda n: (0, 0)),
                pl.BlockSpec((hid, 1), lambda n: (0, 0)),
                pl.BlockSpec((Cmid, hid), lambda n: (0, 0)),
                pl.BlockSpec((Cmid, 1), lambda n: (0, 0)),
            ],
            out_specs=pl.BlockSpec((1, Cmid, 1), lambda n: (n, 0, 0)),
        ),
        compiler_params=pltpu.CompilerParams(
            dimension_semantics=("parallel",),
            vmem_limit_bytes=_VMEM_LIMIT_BYTES),
    )(gates_nchw.reshape(N, Cmid, HW), w1, b1.reshape(hid, 1),
      w2, b2.reshape(Cmid, 1))
    return out.reshape(N, Cmid, 1, 1)


# ---------------------------------------------------------------------------
# Conv wrappers (layout plumbing only; compute is in the Pallas kernels)
# ---------------------------------------------------------------------------
def _fold_bn(bn, eps=1e-5):
    scale = bn['gamma'] * lax.rsqrt(bn['var'] + eps)
    bias = bn['beta'] - bn['mean'] * scale
    return scale, bias


def conv1x1_bn_act(x, w, bn, *, relu):
    N, C, H, W = x.shape
    scale, bias = _fold_bn(bn)
    y = _gemm_bn_act(x.reshape(N, C, H * W), w.reshape(w.shape[0], C),
                     scale, bias, relu=relu)
    return y.reshape(N, -1, H, W)


def _im2col_3x3(x_nchw):
    N, C, H, W = x_nchw.shape
    xp = jnp.pad(x_nchw, ((0, 0), (0, 0), (1, 1), (1, 1)))
    cols = []
    for ky in range(3):
        for kx in range(3):
            cols.append(xp[:, :, ky:ky + H, kx:kx + W])
    return jnp.concatenate(cols, axis=1).reshape(N, 9 * C, H * W)  # rows = tap*C + c


def conv3x3_bn_act(x, w, bn, *, relu, gate=None, residual=None):
    """3x3 conv (stride 1, pad 1) + folded BN (+ gate, residual, ReLU) fused in Pallas."""
    N, C, H, W = x.shape
    Cout = w.shape[0]
    cols = _im2col_3x3(x)                                           # (N, 9C, HW)
    w_mat = jnp.transpose(w, (0, 2, 3, 1)).reshape(Cout, 9 * C)     # matches row order
    scale, bias = _fold_bn(bn)
    g = None
    if gate is not None:                                            # gate: (N, C, 1, 1)
        g = jnp.tile(gate.reshape(N, C, 1), (1, 9, 1))              # (N, 9C, 1)
    r = None
    if residual is not None:
        r = residual.reshape(N, Cout, H * W)
    y = _gemm_bn_act(cols, w_mat, scale, bias, relu=relu, gate=g, residual=r)
    return y.reshape(N, Cout, H, W)


# ---------------------------------------------------------------------------
# RGPU forward (Pallas) and pure-JAX reference
# ---------------------------------------------------------------------------
def rgpu_forward(x, params, *, num_groups, hidden_dim):
    hid = hidden_dim
    E = num_groups * hid

    xe = conv1x1_bn_act(x, params['expand_w'], params['expand_bn'], relu=True)
    xs = jnp.split(xe, num_groups, axis=1)

    outs, gates = [], []
    fork = None
    for g in range(num_groups):
        inp = xs[g] if g == 0 else jnp.concatenate([xs[g], fork], axis=1)
        y = conv3x3_bn_act(inp, params['interact_w'][g], params['interact_bn'][g],
                           relu=True)
        if g < num_groups - 1:
            o, fork, gt = jnp.split(y, 3, axis=1)
        else:
            o, gt = jnp.split(y, 2, axis=1)
        outs.append(o)
        gates.append(gt)

    out = jnp.concatenate(outs, axis=1)
    gcat = jnp.concatenate(gates, axis=1)
    gate = gate_generator(gcat,
                          params['gate_w1'].reshape(hid, E), params['gate_b1'],
                          params['gate_w2'].reshape(E, hid), params['gate_b2'])

    # fuse = DifferenceAwareOps (identity, num_frames=1) + Conv3x3 + BN, then
    # final ReLU(out + x) -- all fused into one Pallas call.
    y = conv3x3_bn_act(out, params['fuse_w'], params['fuse_bn'], relu=True,
                       gate=gate, residual=x)
    return y


def rgpu_reference(x, params, *, num_groups, hidden_dim):
    prec = lax.Precision.HIGHEST

    def conv(a, w, pad):
        return lax.conv_general_dilated(
            a, w, (1, 1), pad, dimension_numbers=('NCHW', 'OIHW', 'NCHW'),
            precision=prec)

    def cbr(a, w, bn, pad, relu):
        s, b = _fold_bn(bn)
        y = conv(a, w, pad) * s[None, :, None, None] + b[None, :, None, None]
        return jnp.maximum(y, 0.0) if relu else y

    xe = cbr(x, params['expand_w'], params['expand_bn'], ((0, 0), (0, 0)), True)
    xs = jnp.split(xe, num_groups, axis=1)
    outs, gates = [], []
    fork = None
    for g in range(num_groups):
        inp = xs[g] if g == 0 else jnp.concatenate([xs[g], fork], axis=1)
        y = cbr(inp, params['interact_w'][g], params['interact_bn'][g],
                ((1, 1), (1, 1)), True)
        if g < num_groups - 1:
            o, fork, gt = jnp.split(y, 3, axis=1)
        else:
            o, gt = jnp.split(y, 2, axis=1)
        outs.append(o)
        gates.append(gt)
    out = jnp.concatenate(outs, axis=1)
    gcat = jnp.concatenate(gates, axis=1)

    pooled = jnp.mean(gcat, axis=(2, 3), keepdims=True)
    h = conv(pooled, params['gate_w1'], ((0, 0), (0, 0))) \
        + params['gate_b1'][None, :, None, None]
    h = jnp.maximum(h, 0.0)
    z = conv(h, params['gate_w2'], ((0, 0), (0, 0))) \
        + params['gate_b2'][None, :, None, None]
    gate = jax.nn.softmax(z, axis=1)

    fused = cbr(out * gate, params['fuse_w'], params['fuse_bn'],
                ((1, 1), (1, 1)), False)
    return jnp.maximum(fused + x, 0.0)


# ---------------------------------------------------------------------------
# Deterministic parameter init (inference-mode BN stats)
# ---------------------------------------------------------------------------
def init_params(key, in_c, num_groups, hidden_dim):
    E = num_groups * hidden_dim
    keys = iter(jax.random.split(key, 64))

    def nrm(shape, scale):
        return scale * jax.random.normal(next(keys), shape, jnp.float32)

    def bn_params(c):
        return dict(
            gamma=1.0 + 0.1 * jax.random.normal(next(keys), (c,), jnp.float32),
            beta=0.1 * jax.random.normal(next(keys), (c,), jnp.float32),
            mean=0.1 * jax.random.normal(next(keys), (c,), jnp.float32),
            var=1.0 + 0.1 * jnp.abs(jax.random.normal(next(keys), (c,), jnp.float32)),
        )

    p = {
        'expand_w': nrm((E, in_c, 1, 1), 0.5),
        'expand_bn': bn_params(E),
        'interact_w': [],
        'interact_bn': [],
        'gate_w1': nrm((hidden_dim, E, 1, 1), 0.3),
        'gate_b1': nrm((hidden_dim,), 0.1),
        'gate_w2': nrm((E, hidden_dim, 1, 1), 0.3),
        'gate_b2': nrm((E,), 0.1),
        'fuse_w': nrm((in_c, E, 3, 3), 0.3),
        'fuse_bn': bn_params(in_c),
    }
    for g in range(num_groups):
        cin = hidden_dim if g == 0 else 2 * hidden_dim
        cout = 3 * hidden_dim if g < num_groups - 1 else 2 * hidden_dim
        p['interact_w'].append(nrm((cout, cin, 3, 3), 0.3))
        p['interact_bn'].append(bn_params(cout))
    return p


if __name__ == "__main__":
    key = jax.random.PRNGKey(0)
    N, C, H, W = 2, 4, 16, 16
    num_groups = 6
    hidden_dim = C // 2  # matches RGPU default: in_c // 2

    k_x, k_p = jax.random.split(key)
    x = jax.random.normal(k_x, (N, C, H, W), dtype=jnp.float32)
    params = init_params(k_p, C, num_groups, hidden_dim)

    fwd = jax.jit(functools.partial(rgpu_forward, num_groups=num_groups,
                                    hidden_dim=hidden_dim))
    ref_fn = jax.jit(functools.partial(rgpu_reference, num_groups=num_groups,
                                       hidden_dim=hidden_dim))

    out = jax.block_until_ready(fwd(x, params))
    ref = jax.block_until_ready(ref_fn(x, params))

    assert out.shape == (N, C, H, W)
    assert bool(jnp.all(jnp.isfinite(out)))
    max_err = float(jnp.max(jnp.abs(out - ref)))
    assert max_err < 5e-2, f"max abs error vs reference: {max_err}"
    print("KERNEL_OK")
</pallas_src>

<mosaic_0001>
module attributes {stable_mosaic.version = 11 : i64} {
  func.func @_gemm_bn_act_kernel(%arg0: i32, %arg1: i32, %arg2: memref<1x4x256xf32, #tpu.memory_space<vmem>>, %arg3: memref<12x4xf32, #tpu.memory_space<vmem>>, %arg4: memref<12x1xf32, #tpu.memory_space<vmem>>, %arg5: memref<12x1xf32, #tpu.memory_space<vmem>>, %arg6: memref<1x12x256xf32, #tpu.memory_space<vmem>>) attributes {dimension_semantics = [#tpu.dimension_semantics<parallel>, #tpu.dimension_semantics<parallel>], iteration_bounds = array<i64: 2, 1>, scalar_prefetch = 0 : i64, scratch_operands = 0 : i64, tpu.core_type = #tpu.core_type<tc>, window_params = [{transform_indices = @transform_0, window_bounds = array<i64: 1, 4, 256>}, {pipeline_mode = #tpu.pipeline_mode<synchronous>, transform_indices = @transform_1, window_bounds = array<i64: 12, 4>}, {pipeline_mode = #tpu.pipeline_mode<synchronous>, transform_indices = @transform_2, window_bounds = array<i64: 12, 1>}, {pipeline_mode = #tpu.pipeline_mode<synchronous>, transform_indices = @transform_3, window_bounds = array<i64: 12, 1>}, {transform_indices = @transform_4, window_bounds = array<i64: 1, 12, 256>}]} {
    %c0 = arith.constant 0 : index
    %c0_0 = arith.constant 0 : index
    %c0_1 = arith.constant 0 : index
    %0 = vector.load %arg2[%c0, %c0_0, %c0_1] : memref<1x4x256xf32, #tpu.memory_space<vmem>>, vector<1x4x256xf32>
    %1 = vector.shape_cast %0 : vector<1x4x256xf32> to vector<4x256xf32>
    %c0_2 = arith.constant 0 : index
    %c0_3 = arith.constant 0 : index
    %2 = vector.load %arg3[%c0_2, %c0_3] : memref<12x4xf32, #tpu.memory_space<vmem>>, vector<12x4xf32>
    %cst = arith.constant dense<0.000000e+00> : vector<12x256xf32>
    %3 = tpu.matmul %2, %1, %cst {dimension_numbers = #tpu.dot_dimension_numbers<[1], [0], [0], [1], [0, 0, 1, 1], [], []>} : vector<12x4xf32>, vector<4x256xf32>, vector<12x256xf32> -> vector<12x256xf32>
    %c0_4 = arith.constant 0 : index
    %c0_5 = arith.constant 0 : index
    %4 = vector.load %arg4[%c0_4, %c0_5] : memref<12x1xf32, #tpu.memory_space<vmem>>, vector<12x1xf32>
    %5 = vector.broadcast %4 : vector<12x1xf32> to vector<12x256xf32>
    %6 = arith.mulf %3, %5 : vector<12x256xf32>
    %c0_6 = arith.constant 0 : index
    %c0_7 = arith.constant 0 : index
    %7 = vector.load %arg5[%c0_6, %c0_7] : memref<12x1xf32, #tpu.memory_space<vmem>>, vector<12x1xf32>
    %8 = vector.broadcast %7 : vector<12x1xf32> to vector<12x256xf32>
    %9 = arith.addf %6, %8 : vector<12x256xf32>
    %cst_8 = arith.constant 0.000000e+00 : f32
    %10 = vector.broadcast %cst_8 : f32 to vector<12x256xf32>
    %11 = arith.maximumf %9, %10 : vector<12x256xf32>
    %c0_9 = arith.constant 0 : index
    %c0_10 = arith.constant 0 : index
    %c0_11 = arith.constant 0 : index
    %12 = vector.load %arg6[%c0_9, %c0_10, %c0_11] : memref<1x12x256xf32, #tpu.memory_space<vmem>>, vector<1x12x256xf32>
    %13 = vector.shape_cast %12 : vector<1x12x256xf32> to vector<12x256xf32>
    %14 = vector.shape_cast %11 : vector<12x256xf32> to vector<1x12x256xf32>
    tpu.vector_store %arg6[%c0_9, %c0_10, %c0_11], %14 {strides = array<i32>} : memref<1x12x256xf32, #tpu.memory_space<vmem>>, vector<1x12x256xf32>,
    return
  }
  func.func @transform_0(%arg0: i32, %arg1: i32) -> (i32, i32, i32) {
    %c0_i32 = arith.constant 0 : i32
    %c0_i32_0 = arith.constant 0 : i32
    return %arg0, %c0_i32, %arg1 : i32, i32, i32
  }
  func.func @transform_1(%arg0: i32, %arg1: i32) -> (i32, i32) {
    %c0_i32 = arith.constant 0 : i32
    %c0_i32_0 = arith.constant 0 : i32
    %c0_i32_1 = arith.constant 0 : i32
    return %c0_i32, %c0_i32_0 : i32, i32
  }
  func.func @transform_2(%arg0: i32, %arg1: i32) -> (i32, i32) {
    %c0_i32 = arith.constant 0 : i32
    %c0_i32_0 = arith.constant 0 : i32
    %c0_i32_1 = arith.constant 0 : i32
    return %c0_i32, %c0_i32_0 : i32, i32
  }
  func.func @transform_3(%arg0: i32, %arg1: i32) -> (i32, i32) {
    %c0_i32 = arith.constant 0 : i32
    %c0_i32_0 = arith.constant 0 : i32
    %c0_i32_1 = arith.constant 0 : i32
    return %c0_i32, %c0_i32_0 : i32, i32
  }
  func.func @transform_4(%arg0: i32, %arg1: i32) -> (i32, i32, i32) {
    %c0_i32 = arith.constant 0 : i32
    %c0_i32_0 = arith.constant 0 : i32
    return %arg0, %c0_i32, %arg1 : i32, i32, i32
  }
}

module attributes {stable_mosaic.version = 11 : i64} {
  func.func @_gemm_bn_act_kernel(%arg0: i32, %arg1: i32, %arg2: memref<1x18x256xf32, #tpu.memory_space<vmem>>, %arg3: memref<6x18xf32, #tpu.memory_space<vmem>>, %arg4: memref<6x1xf32, #tpu.memory_space<vmem>>, %arg5: memref<6x1xf32, #tpu.memory_space<vmem>>, %arg6: memref<1x6x256xf32, #tpu.memory_space<vmem>>) attributes {dimension_semantics = [#tpu.dimension_semantics<parallel>, #tpu.dimension_semantics<parallel>], iteration_bounds = array<i64: 2, 1>, scalar_prefetch = 0 : i64, scratch_operands = 0 : i64, tpu.core_type = #tpu.core_type<tc>, window_params = [{transform_indices = @transform_0, window_bounds = array<i64: 1, 18, 256>}, {pipeline_mode = #tpu.pipeline_mode<synchronous>, transform_indices = @transform_1, window_bounds = array<i64: 6, 18>}, {pipeline_mode = #tpu.pipeline_mode<synchronous>, transform_indices = @transform_2, window_bounds = array<i64: 6, 1>}, {pipeline_mode = #tpu.pipeline_mode<synchronous>, transform_indices = @transform_3, window_bounds = array<i64: 6, 1>}, {transform_indices = @transform_4, window_bounds = array<i64: 1, 6, 256>}]} {
    %c0 = arith.constant 0 : index
    %c0_0 = arith.constant 0 : index
    %c0_1 = arith.constant 0 : index
    %0 = vector.load %arg2[%c0, %c0_0, %c0_1] : memref<1x18x256xf32, #tpu.memory_space<vmem>>, vector<1x18x256xf32>
    %1 = vector.shape_cast %0 : vector<1x18x256xf32> to vector<18x256xf32>
    %c0_2 = arith.constant 0 : index
    %c0_3 = arith.constant 0 : index
    %2 = vector.load %arg3[%c0_2, %c0_3] : memref<6x18xf32, #tpu.memory_space<vmem>>, vector<6x18xf32>
    %cst = arith.constant dense<0.000000e+00> : vector<6x256xf32>
    %3 = tpu.matmul %2, %1, %cst {dimension_numbers = #tpu.dot_dimension_numbers<[1], [0], [0], [1], [0, 0, 1, 1], [], []>} : vector<6x18xf32>, vector<18x256xf32>, vector<6x256xf32> -> vector<6x256xf32>
    %c0_4 = arith.constant 0 : index
    %c0_5 = arith.constant 0 : index
    %4 = vector.load %arg4[%c0_4, %c0_5] : memref<6x1xf32, #tpu.memory_space<vmem>>, vector<6x1xf32>
    %5 = vector.broadcast %4 : vector<6x1xf32> to vector<6x256xf32>
    %6 = arith.mulf %3, %5 : vector<6x256xf32>
    %c0_6 = arith.constant 0 : index
    %c0_7 = arith.constant 0 : index
    %7 = vector.load %arg5[%c0_6, %c0_7] : memref<6x1xf32, #tpu.memory_space<vmem>>, vector<6x1xf32>
    %8 = vector.broadcast %7 : vector<6x1xf32> to vector<6x256xf32>
    %9 = arith.addf %6, %8 : vector<6x256xf32>
    %cst_8 = arith.constant 0.000000e+00 : f32
    %10 = vector.broadcast %cst_8 : f32 to vector<6x256xf32>
    %11 = arith.maximumf %9, %10 : vector<6x256xf32>
    %c0_9 = arith.constant 0 : index
    %c0_10 = arith.constant 0 : index
    %c0_11 = arith.constant 0 : index
    %12 = vector.load %arg6[%c0_9, %c0_10, %c0_11] : memref<1x6x256xf32, #tpu.memory_space<vmem>>, vector<1x6x256xf32>
    %13 = vector.shape_cast %12 : vector<1x6x256xf32> to vector<6x256xf32>
    %14 = vector.shape_cast %11 : vector<6x256xf32> to vector<1x6x256xf32>
    tpu.vector_store %arg6[%c0_9, %c0_10, %c0_11], %14 {strides = array<i32>} : memref<1x6x256xf32, #tpu.memory_space<vmem>>, vector<1x6x256xf32>,
    return
  }
  func.func @transform_0(%arg0: i32, %arg1: i32) -> (i32, i32, i32) {
    %c0_i32 = arith.constant 0 : i32
    %c0_i32_0 = arith.constant 0 : i32
    return %arg0, %c0_i32, %arg1 : i32, i32, i32
  }
  func.func @transform_1(%arg0: i32, %arg1: i32) -> (i32, i32) {
    %c0_i32 = arith.constant 0 : i32
    %c0_i32_0 = arith.constant 0 : i32
    %c0_i32_1 = arith.constant 0 : i32
    return %c0_i32, %c0_i32_0 : i32, i32
  }
  func.func @transform_2(%arg0: i32, %arg1: i32) -> (i32, i32) {
    %c0_i32 = arith.constant 0 : i32
    %c0_i32_0 = arith.constant 0 : i32
    %c0_i32_1 = arith.constant 0 : i32
    return %c0_i32, %c0_i32_0 : i32, i32
  }
  func.func @transform_3(%arg0: i32, %arg1: i32) -> (i32, i32) {
    %c0_i32 = arith.constant 0 : i32
    %c0_i32_0 = arith.constant 0 : i32
    %c0_i32_1 = arith.constant 0 : i32
    return %c0_i32, %c0_i32_0 : i32, i32
  }
  func.func @transform_4(%arg0: i32, %arg1: i32) -> (i32, i32, i32) {
    %c0_i32 = arith.constant 0 : i32
    %c0_i32_0 = arith.constant 0 : i32
    return %arg0, %c0_i32, %arg1 : i32, i32, i32
  }
}

module attributes {stable_mosaic.version = 11 : i64} {
  func.func @_gemm_bn_act_kernel(%arg0: i32, %arg1: i32, %arg2: memref<1x36x256xf32, #tpu.memory_space<vmem>>, %arg3: memref<6x36xf32, #tpu.memory_space<vmem>>, %arg4: memref<6x1xf32, #tpu.memory_space<vmem>>, %arg5: memref<6x1xf32, #tpu.memory_space<vmem>>, %arg6: memref<1x6x256xf32, #tpu.memory_space<vmem>>) attributes {dimension_semantics = [#tpu.dimension_semantics<parallel>, #tpu.dimension_semantics<parallel>], iteration_bounds = array<i64: 2, 1>, scalar_prefetch = 0 : i64, scratch_operands = 0 : i64, tpu.core_type = #tpu.core_type<tc>, window_params = [{transform_indices = @transform_0, window_bounds = array<i64: 1, 36, 256>}, {pipeline_mode = #tpu.pipeline_mode<synchronous>, transform_indices = @transform_1, window_bounds = array<i64: 6, 36>}, {pipeline_mode = #tpu.pipeline_mode<synchronous>, transform_indices = @transform_2, window_bounds = array<i64: 6, 1>}, {pipeline_mode = #tpu.pipeline_mode<synchronous>, transform_indices = @transform_3, window_bounds = array<i64: 6, 1>}, {transform_indices = @transform_4, window_bounds = array<i64: 1, 6, 256>}]} {
    %c0 = arith.constant 0 : index
    %c0_0 = arith.constant 0 : index
    %c0_1 = arith.constant 0 : index
    %0 = vector.load %arg2[%c0, %c0_0, %c0_1] : memref<1x36x256xf32, #tpu.memory_space<vmem>>, vector<1x36x256xf32>
    %1 = vector.shape_cast %0 : vector<1x36x256xf32> to vector<36x256xf32>
    %c0_2 = arith.constant 0 : index
    %c0_3 = arith.constant 0 : index
    %2 = vector.load %arg3[%c0_2, %c0_3] : memref<6x36xf32, #tpu.memory_space<vmem>>, vector<6x36xf32>
    %cst = arith.constant dense<0.000000e+00> : vector<6x256xf32>
    %3 = tpu.matmul %2, %1, %cst {dimension_numbers = #tpu.dot_dimension_numbers<[1], [0], [0], [1], [0, 0, 1, 1], [], []>} : vector<6x36xf32>, vector<36x256xf32>, vector<6x256xf32> -> vector<6x256xf32>
    %c0_4 = arith.constant 0 : index
    %c0_5 = arith.constant 0 : index
    %4 = vector.load %arg4[%c0_4, %c0_5] : memref<6x1xf32, #tpu.memory_space<vmem>>, vector<6x1xf32>
    %5 = vector.broadcast %4 : vector<6x1xf32> to vector<6x256xf32>
    %6 = arith.mulf %3, %5 : vector<6x256xf32>
    %c0_6 = arith.constant 0 : index
    %c0_7 = arith.constant 0 : index
    %7 = vector.load %arg5[%c0_6, %c0_7] : memref<6x1xf32, #tpu.memory_space<vmem>>, vector<6x1xf32>
    %8 = vector.broadcast %7 : vector<6x1xf32> to vector<6x256xf32>
    %9 = arith.addf %6, %8 : vector<6x256xf32>
    %cst_8 = arith.constant 0.000000e+00 : f32
    %10 = vector.broadcast %cst_8 : f32 to vector<6x256xf32>
    %11 = arith.maximumf %9, %10 : vector<6x256xf32>
    %c0_9 = arith.constant 0 : index
    %c0_10 = arith.constant 0 : index
    %c0_11 = arith.constant 0 : index
    %12 = vector.load %arg6[%c0_9, %c0_10, %c0_11] : memref<1x6x256xf32, #tpu.memory_space<vmem>>, vector<1x6x256xf32>
    %13 = vector.shape_cast %12 : vector<1x6x256xf32> to vector<6x256xf32>
    %14 = vector.shape_cast %11 : vector<6x256xf32> to vector<1x6x256xf32>
    tpu.vector_store %arg6[%c0_9, %c0_10, %c0_11], %14 {strides = array<i32>} : memref<1x6x256xf32, #tpu.memory_space<vmem>>, vector<1x6x256xf32>,
    return
  }
  func.func @transform_0(%arg0: i32, %arg1: i32) -> (i32, i32, i32) {
    %c0_i32 = arith.constant 0 : i32
    %c0_i32_0 = arith.constant 0 : i32
    return %arg0, %c0_i32, %arg1 : i32, i32, i32
  }
  func.func @transform_1(%arg0: i32, %arg1: i32) -> (i32, i32) {
    %c0_i32 = arith.constant 0 : i32
    %c0_i32_0 = arith.constant 0 : i32
    %c0_i32_1 = arith.constant 0 : i32
    return %c0_i32, %c0_i32_0 : i32, i32
  }
  func.func @transform_2(%arg0: i32, %arg1: i32) -> (i32, i32) {
    %c0_i32 = arith.constant 0 : i32
    %c0_i32_0 = arith.constant 0 : i32
    %c0_i32_1 = arith.constant 0 : i32
    return %c0_i32, %c0_i32_0 : i32, i32
  }
  func.func @transform_3(%arg0: i32, %arg1: i32) -> (i32, i32) {
    %c0_i32 = arith.constant 0 : i32
    %c0_i32_0 = arith.constant 0 : i32
    %c0_i32_1 = arith.constant 0 : i32
    return %c0_i32, %c0_i32_0 : i32, i32
  }
  func.func @transform_4(%arg0: i32, %arg1: i32) -> (i32, i32, i32) {
    %c0_i32 = arith.constant 0 : i32
    %c0_i32_0 = arith.constant 0 : i32
    return %arg0, %c0_i32, %arg1 : i32, i32, i32
  }
}

module attributes {stable_mosaic.version = 11 : i64} {
  func.func @_gemm_bn_act_kernel(%arg0: i32, %arg1: i32, %arg2: memref<1x36x256xf32, #tpu.memory_space<vmem>>, %arg3: memref<4x36xf32, #tpu.memory_space<vmem>>, %arg4: memref<4x1xf32, #tpu.memory_space<vmem>>, %arg5: memref<4x1xf32, #tpu.memory_space<vmem>>, %arg6: memref<1x4x256xf32, #tpu.memory_space<vmem>>) attributes {dimension_semantics = [#tpu.dimension_semantics<parallel>, #tpu.dimension_semantics<parallel>], iteration_bounds = array<i64: 2, 1>, scalar_prefetch = 0 : i64, scratch_operands = 0 : i64, tpu.core_type = #tpu.core_type<tc>, window_params = [{transform_indices = @transform_0, window_bounds = array<i64: 1, 36, 256>}, {pipeline_mode = #tpu.pipeline_mode<synchronous>, transform_indices = @transform_1, window_bounds = array<i64: 4, 36>}, {pipeline_mode = #tpu.pipeline_mode<synchronous>, transform_indices = @transform_2, window_bounds = array<i64: 4, 1>}, {pipeline_mode = #tpu.pipeline_mode<synchronous>, transform_indices = @transform_3, window_bounds = array<i64: 4, 1>}, {transform_indices = @transform_4, window_bounds = array<i64: 1, 4, 256>}]} {
    %c0 = arith.constant 0 : index
    %c0_0 = arith.constant 0 : index
    %c0_1 = arith.constant 0 : index
    %0 = vector.load %arg2[%c0, %c0_0, %c0_1] : memref<1x36x256xf32, #tpu.memory_space<vmem>>, vector<1x36x256xf32>
    %1 = vector.shape_cast %0 : vector<1x36x256xf32> to vector<36x256xf32>
    %c0_2 = arith.constant 0 : index
    %c0_3 = arith.constant 0 : index
    %2 = vector.load %arg3[%c0_2, %c0_3] : memref<4x36xf32, #tpu.memory_space<vmem>>, vector<4x36xf32>
    %cst = arith.constant dense<0.000000e+00> : vector<4x256xf32>
    %3 = tpu.matmul %2, %1, %cst {dimension_numbers = #tpu.dot_dimension_numbers<[1], [0], [0], [1], [0, 0, 1, 1], [], []>} : vector<4x36xf32>, vector<36x256xf32>, vector<4x256xf32> -> vector<4x256xf32>
    %c0_4 = arith.constant 0 : index
    %c0_5 = arith.constant 0 : index
    %4 = vector.load %arg4[%c0_4, %c0_5] : memref<4x1xf32, #tpu.memory_space<vmem>>, vector<4x1xf32>
    %5 = vector.broadcast %4 : vector<4x1xf32> to vector<4x256xf32>
    %6 = arith.mulf %3, %5 : vector<4x256xf32>
    %c0_6 = arith.constant 0 : index
    %c0_7 = arith.constant 0 : index
    %7 = vector.load %arg5[%c0_6, %c0_7] : memref<4x1xf32, #tpu.memory_space<vmem>>, vector<4x1xf32>
    %8 = vector.broadcast %7 : vector<4x1xf32> to vector<4x256xf32>
    %9 = arith.addf %6, %8 : vector<4x256xf32>
    %cst_8 = arith.constant 0.000000e+00 : f32
    %10 = vector.broadcast %cst_8 : f32 to vector<4x256xf32>
    %11 = arith.maximumf %9, %10 : vector<4x256xf32>
    %c0_9 = arith.constant 0 : index
    %c0_10 = arith.constant 0 : index
    %c0_11 = arith.constant 0 : index
    %12 = vector.load %arg6[%c0_9, %c0_10, %c0_11] : memref<1x4x256xf32, #tpu.memory_space<vmem>>, vector<1x4x256xf32>
    %13 = vector.shape_cast %12 : vector<1x4x256xf32> to vector<4x256xf32>
    %14 = vector.shape_cast %11 : vector<4x256xf32> to vector<1x4x256xf32>
    tpu.vector_store %arg6[%c0_9, %c0_10, %c0_11], %14 {strides = array<i32>} : memref<1x4x256xf32, #tpu.memory_space<vmem>>, vector<1x4x256xf32>,
    return
  }
  func.func @transform_0(%arg0: i32, %arg1: i32) -> (i32, i32, i32) {
    %c0_i32 = arith.constant 0 : i32
    %c0_i32_0 = arith.constant 0 : i32
    return %arg0, %c0_i32, %arg1 : i32, i32, i32
  }
  func.func @transform_1(%arg0: i32, %arg1: i32) -> (i32, i32) {
    %c0_i32 = arith.constant 0 : i32
    %c0_i32_0 = arith.constant 0 : i32
    %c0_i32_1 = arith.constant 0 : i32
    return %c0_i32, %c0_i32_0 : i32, i32
  }
  func.func @transform_2(%arg0: i32, %arg1: i32) -> (i32, i32) {
    %c0_i32 = arith.constant 0 : i32
    %c0_i32_0 = arith.constant 0 : i32
    %c0_i32_1 = arith.constant 0 : i32
    return %c0_i32, %c0_i32_0 : i32, i32
  }
  func.func @transform_3(%arg0: i32, %arg1: i32) -> (i32, i32) {
    %c0_i32 = arith.constant 0 : i32
    %c0_i32_0 = arith.constant 0 : i32
    %c0_i32_1 = arith.constant 0 : i32
    return %c0_i32, %c0_i32_0 : i32, i32
  }
  func.func @transform_4(%arg0: i32, %arg1: i32) -> (i32, i32, i32) {
    %c0_i32 = arith.constant 0 : i32
    %c0_i32_0 = arith.constant 0 : i32
    return %arg0, %c0_i32, %arg1 : i32, i32, i32
  }
}

module attributes {stable_mosaic.version = 11 : i64} {
  func.func @_gate_kernel(%arg0: i32, %arg1: memref<1x12x256xf32, #tpu.memory_space<vmem>>, %arg2: memref<2x12xf32, #tpu.memory_space<vmem>>, %arg3: memref<2x1xf32, #tpu.memory_space<vmem>>, %arg4: memref<12x2xf32, #tpu.memory_space<vmem>>, %arg5: memref<12x1xf32, #tpu.memory_space<vmem>>, %arg6: memref<1x12x1xf32, #tpu.memory_space<vmem>>) attributes {dimension_semantics = [#tpu.dimension_semantics<parallel>], iteration_bounds = array<i64: 2>, scalar_prefetch = 0 : i64, scratch_operands = 0 : i64, tpu.core_type = #tpu.core_type<tc>, window_params = [{transform_indices = @transform_0, window_bounds = array<i64: 1, 12, 256>}, {pipeline_mode = #tpu.pipeline_mode<synchronous>, transform_indices = @transform_1, window_bounds = array<i64: 2, 12>}, {pipeline_mode = #tpu.pipeline_mode<synchronous>, transform_indices = @transform_2, window_bounds = array<i64: 2, 1>}, {pipeline_mode = #tpu.pipeline_mode<synchronous>, transform_indices = @transform_3, window_bounds = array<i64: 12, 2>}, {pipeline_mode = #tpu.pipeline_mode<synchronous>, transform_indices = @transform_4, window_bounds = array<i64: 12, 1>}, {transform_indices = @transform_5, window_bounds = array<i64: 1, 12, 1>}]} {
    %c0 = arith.constant 0 : index
    %c0_0 = arith.constant 0 : index
    %c0_1 = arith.constant 0 : index
    %0 = vector.load %arg1[%c0, %c0_0, %c0_1] : memref<1x12x256xf32, #tpu.memory_space<vmem>>, vector<1x12x256xf32>
    %1 = vector.shape_cast %0 : vector<1x12x256xf32> to vector<12x256xf32>
    %cst = arith.constant dense<0.000000e+00> : vector<12xf32>
    %2 = vector.multi_reduction <add>, %1, %cst [1] : vector<12x256xf32> to vector<12xf32>
    %3 = vector.shape_cast %2 : vector<12xf32> to vector<12x1xf32>
    %cst_2 = arith.constant 3.906250e-03 : f32
    %4 = vector.broadcast %cst_2 : f32 to vector<12x1xf32>
    %5 = arith.mulf %3, %4 : vector<12x1xf32>
    %c0_3 = arith.constant 0 : index
    %c0_4 = arith.constant 0 : index
    %6 = vector.load %arg2[%c0_3, %c0_4] : memref<2x12xf32, #tpu.memory_space<vmem>>, vector<2x12xf32>
    %cst_5 = arith.constant dense<0.000000e+00> : vector<2x1xf32>
    %7 = tpu.matmul %6, %5, %cst_5 {dimension_numbers = #tpu.dot_dimension_numbers<[1], [0], [0], [1], [0, 0, 1, 1], [], []>} : vector<2x12xf32>, vector<12x1xf32>, vector<2x1xf32> -> vector<2x1xf32>
    %c0_6 = arith.constant 0 : index
    %c0_7 = arith.constant 0 : index
    %8 = vector.load %arg3[%c0_6, %c0_7] : memref<2x1xf32, #tpu.memory_space<vmem>>, vector<2x1xf32>
    %9 = arith.addf %7, %8 : vector<2x1xf32>
    %cst_8 = arith.constant 0.000000e+00 : f32
    %10 = vector.broadcast %cst_8 : f32 to vector<2x1xf32>
    %11 = arith.maximumf %9, %10 : vector<2x1xf32>
    %c0_9 = arith.constant 0 : index
    %c0_10 = arith.constant 0 : index
    %12 = vector.load %arg4[%c0_9, %c0_10] : memref<12x2xf32, #tpu.memory_space<vmem>>, vector<12x2xf32>
    %cst_11 = arith.constant dense<0.000000e+00> : vector<12x1xf32>
    %13 = tpu.matmul %12, %11, %cst_11 {dimension_numbers = #tpu.dot_dimension_numbers<[1], [0], [0], [1], [0, 0, 1, 1], [], []>} : vector<12x2xf32>, vector<2x1xf32>, vector<12x1xf32> -> vector<12x1xf32>
    %c0_12 = arith.constant 0 : index
    %c0_13 = arith.constant 0 : index
    %14 = vector.load %arg5[%c0_12, %c0_13] : memref<12x1xf32, #tpu.memory_space<vmem>>, vector<12x1xf32>
    %15 = arith.addf %13, %14 : vector<12x1xf32>
    %cst_14 = arith.constant dense<0xFF800000> : vector<1xf32>
    %16 = vector.multi_reduction <maximumf>, %15, %cst_14 [0] : vector<12x1xf32> to vector<1xf32>
    %17 = vector.shape_cast %16 : vector<1xf32> to vector<1x1xf32>
    %18 = vector.broadcast %17 : vector<1x1xf32> to vector<12x1xf32>
    %19 = arith.subf %15, %18 : vector<12x1xf32>
    %20 = math.exp %19 : vector<12x1xf32>
    %cst_15 = arith.constant dense<0.000000e+00> : vector<1xf32>
    %21 = vector.multi_reduction <add>, %20, %cst_15 [0] : vector<12x1xf32> to vector<1xf32>
    %22 = vector.shape_cast %21 : vector<1xf32> to vector<1x1xf32>
    %23 = vector.broadcast %22 : vector<1x1xf32> to vector<12x1xf32>
    %24 = arith.divf %20, %23 : vector<12x1xf32>
    %c0_16 = arith.constant 0 : index
    %c0_17 = arith.constant 0 : index
    %c0_18 = arith.constant 0 : index
    %25 = vector.load %arg6[%c0_16, %c0_17, %c0_18] : memref<1x12x1xf32, #tpu.memory_space<vmem>>, vector<1x12x1xf32>
    %26 = vector.shape_cast %25 : vector<1x12x1xf32> to vector<12x1xf32>
    %27 = vector.shape_cast %24 : vector<12x1xf32> to vector<1x12x1xf32>
    tpu.vector_store %arg6[%c0_16, %c0_17, %c0_18], %27 {strides = array<i32>} : memref<1x12x1xf32, #tpu.memory_space<vmem>>, vector<1x12x1xf32>,
    return
  }
  func.func @transform_0(%arg0: i32) -> (i32, i32, i32) {
    %c0_i32 = arith.constant 0 : i32
    %c0_i32_0 = arith.constant 0 : i32
    %c0_i32_1 = arith.constant 0 : i32
    return %arg0, %c0_i32, %c0_i32_0 : i32, i32, i32
  }
  func.func @transform_1(%arg0: i32) -> (i32, i32) {
    %c0_i32 = arith.constant 0 : i32
    %c0_i32_0 = arith.constant 0 : i32
    %c0_i32_1 = arith.constant 0 : i32
    return %c0_i32, %c0_i32_0 : i32, i32
  }
  func.func @transform_2(%arg0: i32) -> (i32, i32) {
    %c0_i32 = arith.constant 0 : i32
    %c0_i32_0 = arith.constant 0 : i32
    %c0_i32_1 = arith.constant 0 : i32
    return %c0_i32, %c0_i32_0 : i32, i32
  }
  func.func @transform_3(%arg0: i32) -> (i32, i32) {
    %c0_i32 = arith.constant 0 : i32
    %c0_i32_0 = arith.constant 0 : i32
    %c0_i32_1 = arith.constant 0 : i32
    return %c0_i32, %c0_i32_0 : i32, i32
  }
  func.func @transform_4(%arg0: i32) -> (i32, i32) {
    %c0_i32 = arith.constant 0 : i32
    %c0_i32_0 = arith.constant 0 : i32
    %c0_i32_1 = arith.constant 0 : i32
    return %c0_i32, %c0_i32_0 : i32, i32
  }
  func.func @transform_5(%arg0: i32) -> (i32, i32, i32) {
    %c0_i32 = arith.constant 0 : i32
    %c0_i32_0 = arith.constant 0 : i32
    %c0_i32_1 = arith.constant 0 : i32
    return %arg0, %c0_i32, %c0_i32_0 : i32, i32, i32
  }
}

module attributes {stable_mosaic.version = 11 : i64} {
  func.func @_gemm_bn_act_kernel(%arg0: i32, %arg1: i32, %arg2: memref<1x108x256xf32, #tpu.memory_space<vmem>>, %arg3: memref<4x108xf32, #tpu.memory_space<vmem>>, %arg4: memref<4x1xf32, #tpu.memory_space<vmem>>, %arg5: memref<4x1xf32, #tpu.memory_space<vmem>>, %arg6: memref<1x108x1xf32, #tpu.memory_space<vmem>>, %arg7: memref<1x4x256xf32, #tpu.memory_space<vmem>>, %arg8: memref<1x4x256xf32, #tpu.memory_space<vmem>>) attributes {dimension_semantics = [#tpu.dimension_semantics<parallel>, #tpu.dimension_semantics<parallel>], iteration_bounds = array<i64: 2, 1>, scalar_prefetch = 0 : i64, scratch_operands = 0 : i64, tpu.core_type = #tpu.core_type<tc>, window_params = [{transform_indices = @transform_0, window_bounds = array<i64: 1, 108, 256>}, {pipeline_mode = #tpu.pipeline_mode<synchronous>, transform_indices = @transform_1, window_bounds = array<i64: 4, 108>}, {pipeline_mode = #tpu.pipeline_mode<synchronous>, transform_indices = @transform_2, window_bounds = array<i64: 4, 1>}, {pipeline_mode = #tpu.pipeline_mode<synchronous>, transform_indices = @transform_3, window_bounds = array<i64: 4, 1>}, {transform_indices = @transform_4, window_bounds = array<i64: 1, 108, 1>}, {transform_indices = @transform_5, window_bounds = array<i64: 1, 4, 256>}, {transform_indices = @transform_6, window_bounds = array<i64: 1, 4, 256>}]} {
    %c0 = arith.constant 0 : index
    %c0_0 = arith.constant 0 : index
    %c0_1 = arith.constant 0 : index
    %0 = vector.load %arg2[%c0, %c0_0, %c0_1] : memref<1x108x256xf32, #tpu.memory_space<vmem>>, vector<1x108x256xf32>
    %1 = vector.shape_cast %0 : vector<1x108x256xf32> to vector<108x256xf32>
    %c0_2 = arith.constant 0 : index
    %c0_3 = arith.constant 0 : index
    %c0_4 = arith.constant 0 : index
    %2 = vector.load %arg6[%c0_2, %c0_3, %c0_4] : memref<1x108x1xf32, #tpu.memory_space<vmem>>, vector<1x108x1xf32>
    %3 = vector.shape_cast %2 : vector<1x108x1xf32> to vector<108x1xf32>
    %4 = vector.broadcast %3 : vector<108x1xf32> to vector<108x256xf32>
    %5 = arith.mulf %1, %4 : vector<108x256xf32>
    %c0_5 = arith.constant 0 : index
    %c0_6 = arith.constant 0 : index
    %6 = vector.load %arg3[%c0_5, %c0_6] : memref<4x108xf32, #tpu.memory_space<vmem>>, vector<4x108xf32>
    %cst = arith.constant dense<0.000000e+00> : vector<4x256xf32>
    %7 = tpu.matmul %6, %5, %cst {dimension_numbers = #tpu.dot_dimension_numbers<[1], [0], [0], [1], [0, 0, 1, 1], [], []>} : vector<4x108xf32>, vector<108x256xf32>, vector<4x256xf32> -> vector<4x256xf32>
    %c0_7 = arith.constant 0 : index
    %c0_8 = arith.constant 0 : index
    %8 = vector.load %arg4[%c0_7, %c0_8] : memref<4x1xf32, #tpu.memory_space<vmem>>, vector<4x1xf32>
    %9 = vector.broadcast %8 : vector<4x1xf32> to vector<4x256xf32>
    %10 = arith.mulf %7, %9 : vector<4x256xf32>
    %c0_9 = arith.constant 0 : index
    %c0_10 = arith.constant 0 : index
    %11 = vector.load %arg5[%c0_9, %c0_10] : memref<4x1xf32, #tpu.memory_space<vmem>>, vector<4x1xf32>
    %12 = vector.broadcast %11 : vector<4x1xf32> to vector<4x256xf32>
    %13 = arith.addf %10, %12 : vector<4x256xf32>
    %c0_11 = arith.constant 0 : index
    %c0_12 = arith.constant 0 : index
    %c0_13 = arith.constant 0 : index
    %14 = vector.load %arg7[%c0_11, %c0_12, %c0_13] : memref<1x4x256xf32, #tpu.memory_space<vmem>>, vector<1x4x256xf32>
    %15 = vector.shape_cast %14 : vector<1x4x256xf32> to vector<4x256xf32>
    %16 = arith.addf %13, %15 : vector<4x256xf32>
    %cst_14 = arith.constant 0.000000e+00 : f32
    %17 = vector.broadcast %cst_14 : f32 to vector<4x256xf32>
    %18 = arith.maximumf %16, %17 : vector<4x256xf32>
    %c0_15 = arith.constant 0 : index
    %c0_16 = arith.constant 0 : index
    %c0_17 = arith.constant 0 : index
    %19 = vector.load %arg8[%c0_15, %c0_16, %c0_17] : memref<1x4x256xf32, #tpu.memory_space<vmem>>, vector<1x4x256xf32>
    %20 = vector.shape_cast %19 : vector<1x4x256xf32> to vector<4x256xf32>
    %21 = vector.shape_cast %18 : vector<4x256xf32> to vector<1x4x256xf32>
    tpu.vector_store %arg8[%c0_15, %c0_16, %c0_17], %21 {strides = array<i32>} : memref<1x4x256xf32, #tpu.memory_space<vmem>>, vector<1x4x256xf32>,
    return
  }
  func.func @transform_0(%arg0: i32, %arg1: i32) -> (i32, i32, i32) {
    %c0_i32 = arith.constant 0 : i32
    %c0_i32_0 = arith.constant 0 : i32
    return %arg0, %c0_i32, %arg1 : i32, i32, i32
  }
  func.func @transform_1(%arg0: i32, %arg1: i32) -> (i32, i32) {
    %c0_i32 = arith.constant 0 : i32
    %c0_i32_0 = arith.constant 0 : i32
    %c0_i32_1 = arith.constant 0 : i32
    return %c0_i32, %c0_i32_0 : i32, i32
  }
  func.func @transform_2(%arg0: i32, %arg1: i32) -> (i32, i32) {
    %c0_i32 = arith.constant 0 : i32
    %c0_i32_0 = arith.constant 0 : i32
    %c0_i32_1 = arith.constant 0 : i32
    return %c0_i32, %c0_i32_0 : i32, i32
  }
  func.func @transform_3(%arg0: i32, %arg1: i32) -> (i32, i32) {
    %c0_i32 = arith.constant 0 : i32
    %c0_i32_0 = arith.constant 0 : i32
    %c0_i32_1 = arith.constant 0 : i32
    return %c0_i32, %c0_i32_0 : i32, i32
  }
  func.func @transform_4(%arg0: i32, %arg1: i32) -> (i32, i32, i32) {
    %c0_i32 = arith.constant 0 : i32
    %c0_i32_0 = arith.constant 0 : i32
    %c0_i32_1 = arith.constant 0 : i32
    return %arg0, %c0_i32, %c0_i32_0 : i32, i32, i32
  }
  func.func @transform_5(%arg0: i32, %arg1: i32) -> (i32, i32, i32) {
    %c0_i32 = arith.constant 0 : i32
    %c0_i32_0 = arith.constant 0 : i32
    return %arg0, %c0_i32, %arg1 : i32, i32, i32
  }
  func.func @transform_6(%arg0: i32, %arg1: i32) -> (i32, i32, i32) {
    %c0_i32 = arith.constant 0 : i32
    %c0_i32_0 = arith.constant 0 : i32
    return %arg0, %c0_i32, %arg1 : i32, i32, i32
  }
}

</mosaic_0001>

<llo_original>
// kernel: rgpu_forward.9
$region0: #{rgpu_forward.9}
  #allocation0 [shape = 'u32[]', space=smem, size = 0x4, offset = 0x4, fixed_abs, tag = 'smem constant byte address 0x4 - core index']
  #allocation1 [shape = 'u32[72,128]{1,0:T(1,128)}', space=vmem, size = 0x9000, scoped, tag = 'internal scratch']
  %s0 = inlined_call_operand.vmem [shape: f32[2,4,256], index: 0, kind: input, shape index: {}]
  %s1 = inlined_call_operand.vmem [shape: f32[12,4], index: 1, kind: input, shape index: {}]
  %s2 = inlined_call_operand.vmem [shape: f32[12,1], index: 2, kind: input, shape index: {}]
  %s3 = inlined_call_operand.vmem [shape: f32[12,1], index: 3, kind: input, shape index: {}]
  %s4 = inlined_call_operand.vmem [shape: f32[2,12,256], index: 4, kind: output, shape index: {}]
  %s5 = sld [smem:[#allocation0]]
  $region49: #{rgpu_forward.9} parent=0
    _
  %s7 = ssub.s32 1, %s5
  %s8 = scalar_select 0, %s7, %s5
  loop: start=0, step=1, limit=4
  $region2: #{rgpu_forward.9} parent=0 // loop_pre_header
    _
  $region3: #{rgpu_forward.9} parent=0 // loop_header
    %s10 = sphi 0, %s14
    %p11 = scmp.ge.s32.totalorder %s10, 4
    %s17 = sphi 0, %s29
    %s18 = sphi 0, %s25
    %s19 = sphi 0, %s17
    %s20 = sphi 0, %s18
    %s21 = sphi 0, %s19
    %s22 = sphi 0, %s20
    %s34 = sphi 0, %s36
    %s37 = sphi 0, %s34
    %s38 = sphi 0, %s37
    %s54 = sphi 0, %s38
    %s58 = sphi 0, %s58
    %s60 = sphi 0, %s58
    %s61 = sphi 0, %s60
    %s75 = sphi 0, %s61
    %s79 = sphi 0, %s79
    %s81 = sphi 0, %s79
    %s82 = sphi 0, %s81
    %s96 = sphi 0, %s82
    %s100 = sphi 0, %s100
    %s102 = sphi 0, %s100
    %s103 = sphi 0, %s102
    %s117 = sphi 0, %s103
    %s125 = sphi 0, %s127
    %s128 = sphi 0, %s125
    %s129 = sphi 0, %s128
    %s145 = sphi 0, %s129
  $region4: #{rgpu_forward.9} parent=0 // loop_header_branch
    %13 = sbr.rel (%p11) target = $region8
  $region5: #{rgpu_forward.9} parent=0 // loop_body
    %s15 = ssub.s32 %s10, 1
    %s16 = ssub.s32 %s10, 2
    %s23 = sadd.s32 1, %s18
    %p24 = scmp.ge.s32.totalorder %s23, 1
    %s25 = scalar_select %p24, 0, %s23
    %s26 = sadd.s32 1, %s17
    %s27 = scalar_select %p24, %s26, %s17
    %p28 = scmp.ge.s32.totalorder %s27, 2
    %s29 = scalar_select %p28, 0, %s27
    %s30 = ssub.s32 %s17, %s29
    %s31 = ssub.s32 %s18, %s25
    %s32 = sor.u32 %s30, %s31
    %p33 = scmp.eq.s32.totalorder %s32, 0
    %s35 = sadd.s32 %s34, 1
    %s36 = scalar_select %p33, %s34, %s35
    %p39 = pneg %p33
    %p40 = scmp.eq.s32.totalorder %s10, 1
    %p41 = por %p39, %p40
    %p42 = scmp.ne.s32.totalorder %s34, %s37
    %p43 = scmp.eq.s32.totalorder %s10, 0
    %p44 = por %p42, %p43
    %p45 = scmp.ne.s32.totalorder %s34, %s37
    %p46 = scmp.eq.s32.totalorder %s15, 1
    %p47 = por %p45, %p46
    %p48 = scmp.ne.s32.totalorder %s37, %s38
    %p49 = scmp.eq.s32.totalorder %s15, 0
    %p50 = por %p48, %p49
    %p51 = scmp.ne.s32.totalorder %s37, %s38
    %p52 = scmp.eq.s32.totalorder %s16, 1
    %p53 = por %p51, %p52
    %p55 = scmp.ne.s32.totalorder %s38, %s54
    %p56 = scmp.eq.s32.totalorder %s16, 0
    %p57 = por %p55, %p56
    %s59 = sadd.s32 %s58, 1
    %p62 = scmp.eq.s32.totalorder %s10, 1
    %p63 = scmp.ne.s32.totalorder %s58, %s60
    %p64 = scmp.eq.s32.totalorder %s10, 0
    %p65 = por %p63, %p64
    %p66 = scmp.ne.s32.totalorder %s58, %s60
    %p67 = scmp.eq.s32.totalorder %s15, 1
    %p68 = por %p66, %p67
    %p69 = scmp.ne.s32.totalorder %s60, %s61
    %p70 = scmp.eq.s32.totalorder %s15, 0
    %p71 = por %p69, %p70
    %p72 = scmp.ne.s32.totalorder %s60, %s61
    %p73 = scmp.eq.s32.totalorder %s16, 1
    %p74 = por %p72, %p73
    %p76 = scmp.ne.s32.totalorder %s61, %s75
    %p77 = scmp.eq.s32.totalorder %s16, 0
    %p78 = por %p76, %p77
    %s80 = sadd.s32 %s79, 1
    %p83 = scmp.eq.s32.totalorder %s10, 1
    %p84 = scmp.ne.s32.totalorder %s79, %s81
    %p85 = scmp.eq.s32.totalorder %s10, 0
    %p86 = por %p84, %p85
    %p87 = scmp.ne.s32.totalorder %s79, %s81
    %p88 = scmp.eq.s32.totalorder %s15, 1
    %p89 = por %p87, %p88
    %p90 = scmp.ne.s32.totalorder %s81, %s82
    %p91 = scmp.eq.s32.totalorder %s15, 0
    %p92 = por %p90, %p91
    %p93 = scmp.ne.s32.totalorder %s81, %s82
    %p94 = scmp.eq.s32.totalorder %s16, 1
    %p95 = por %p93, %p94
    %p97 = scmp.ne.s32.totalorder %s82, %s96
    %p98 = scmp.eq.s32.totalorder %s16, 0
    %p99 = por %p97, %p98
    %s101 = sadd.s32 %s100, 1
    %p104 = scmp.eq.s32.totalorder %s10, 1
    %p105 = scmp.ne.s32.totalorder %s100, %s102
    %p106 = scmp.eq.s32.totalorder %s10, 0
    %p107 = por %p105, %p106
    %p108 = scmp.ne.s32.totalorder %s100, %s102
    %p109 = scmp.eq.s32.totalorder %s15, 1
    %p110 = por %p108, %p109
    %p111 = scmp.ne.s32.totalorder %s102, %s103
    %p112 = scmp.eq.s32.totalorder %s15, 0
    %p113 = por %p111, %p112
    %p114 = scmp.ne.s32.totalorder %s102, %s103
    %p115 = scmp.eq.s32.totalorder %s16, 1
    %p116 = por %p114, %p115
    %p118 = scmp.ne.s32.totalorder %s103, %s117
    %p119 = scmp.eq.s32.totalorder %s16, 0
    %p120 = por %p118, %p119
    %s121 = ssub.s32 %s17, %s29
    %s122 = ssub.s32 %s18, %s25
    %s123 = sor.u32 %s121, %s122
    %p124 = scmp.eq.s32.totalorder %s123, 0
    %s126 = sadd.s32 %s125, 1
    %s127 = scalar_select %p124, %s125, %s126
    %p130 = pneg %p124
    %p131 = scmp.eq.s32.totalorder %s10, 1
    %p132 = por %p130, %p131
    %p133 = scmp.ne.s32.totalorder %s125, %s128
    %p134 = scmp.eq.s32.totalorder %s10, 0
    %p135 = por %p133, %p134
    %p136 = scmp.ne.s32.totalorder %s125, %s128
    %p137 = scmp.eq.s32.totalorder %s15, 1
    %p138 = por %p136, %p137
    %p139 = scmp.ne.s32.totalorder %s128, %s129
    %p140 = scmp.eq.s32.totalorder %s15, 0
    %p141 = por %p139, %p140
    %p142 = scmp.ne.s32.totalorder %s128, %s129
    %p143 = scmp.eq.s32.totalorder %s16, 1
    %p144 = por %p142, %p143
    %p146 = scmp.ne.s32.totalorder %s129, %s145
    %p147 = scmp.eq.s32.totalorder %s16, 0
    %p148 = por %p146, %p147
    %p149 = scmp.le.s32.totalorder 1, %s10
    %p150 = scmp.lt.s32.totalorder %s10, 3
    %p151 = pnand %p149, %p150
    %p152 = pneg %p151
    // Predicated region
    $region9: #{rgpu_forward.9} parent=5 // pred_check
      _
    $region10: #{rgpu_forward.9} parent=5 // pred_check_branch
      %154 = sbr.rel (%p151) target = $region12
    $region11: #{rgpu_forward.9} parent=5 // pred_region
      %s155 = ssub.s32 %s10, 1
      // Predicated region
      $region13: #{rgpu_forward.9} parent=11 // pred_check
        %p156 = pneg %p71
      $region14: #{rgpu_forward.9} parent=11 // pred_check_branch
        %158 = sbr.rel (%p156) target = $region16
      $region15: #{rgpu_forward.9} parent=11 // pred_region
        _
      $region16: #{rgpu_forward.9} parent=11 // pred_fallthru
        _
      // Predicated region
      $region17: #{rgpu_forward.9} parent=11 // pred_check
        %p159 = pneg %p92
      $region18: #{rgpu_forward.9} parent=11 // pred_check_branch
        %161 = sbr.rel (%p159) target = $region20
      $region19: #{rgpu_forward.9} parent=11 // pred_region
        _
      $region20: #{rgpu_forward.9} parent=11 // pred_fallthru
        _
      // Predicated region
      $region21: #{rgpu_forward.9} parent=11 // pred_check
        %p162 = pneg %p113
      $region22: #{rgpu_forward.9} parent=11 // pred_check_branch
        %164 = sbr.rel (%p162) target = $region24
      $region23: #{rgpu_forward.9} parent=11 // pred_region
        _
      $region24: #{rgpu_forward.9} parent=11 // pred_fallthru
        _
    $region12: #{rgpu_forward.9} parent=5 // pred_fallthru
      _
    %p165 = scmp.lt.s32.totalorder %s10, 2
    // Predicated region
    $region25: #{rgpu_forward.9} parent=5 // pred_check
      %p166 = pneg %p165
    $region26: #{rgpu_forward.9} parent=5 // pred_check_branch
      %168 = sbr.rel (%p166) target = $region28
    $region27: #{rgpu_forward.9} parent=5 // pred_region
      // Predicated region
      $region29: #{rgpu_forward.9} parent=27 // pred_check
        %p169 = pneg %p44
      $region30: #{rgpu_forward.9} parent=27 // pred_check_branch
        %171 = sbr.rel (%p169) target = $region32
      $region31: #{rgpu_forward.9} parent=27 // pred_region
        %s172 = smul.u32 2, %s18
        %p173 = scmp.lt.s32.totalorder %s17, 1
        %s174 = scalar_select %p173, %s17, 1
        %p175 = scmp.lt.s32.totalorder %s172, 1
        %s176 = scalar_select %p175, %s172, 1
        %s177 = smul.addr %s174, 2
        %s178 = sadd.s32 %s176, %s177
        %s179 = smul.addr %s178, 4
        %s180 = scalar_lea.vmem %s0, %s179
        %s181 = smul.u32 2, %s18
      $region32: #{rgpu_forward.9} parent=27 // pred_fallthru
        _
    $region28: #{rgpu_forward.9} parent=5 // pred_fallthru
      _
    %p182 = scmp.le.s32.totalorder 1, %s10
    %p183 = scmp.lt.s32.totalorder %s10, 3
    %p184 = pnand %p182, %p183
    %p185 = pneg %p184
    // Predicated region
    $region33: #{rgpu_forward.9} parent=5 // pred_check
      _
    $region34: #{rgpu_forward.9} parent=5 // pred_check_branch
      %187 = sbr.rel (%p184) target = $region36
    $region35: #{rgpu_forward.9} parent=5 // pred_region
      %s188 = ssub.s32 %s10, 1
      %s189 = smul.u32 2, %s20
      %p190 = scmp.lt.s32.totalorder %s19, 1
      %s191 = scalar_select %p190, %s19, 1
      %p192 = scmp.lt.s32.totalorder %s189, 1
      %s193 = scalar_select %p192, %s189, 1
      %s194 = smul.addr %s191, 2
      %s195 = sadd.s32 %s193, %s194
      %s196 = smul.addr %s195, 4
      %s197 = scalar_lea.vmem %s0, %s196
      %p198 = pneg %p50
      %p199 = pneg %p47
      %p200 = pneg %p71
      %p201 = pneg %p68
      %p202 = pneg %p92
      %p203 = pneg %p89
      %p204 = pneg %p113
      %p205 = pneg %p110
      %p206 = pneg %p141
      %p207 = pneg %p138
      %s208 = smul.u32 2, %s20
      %p209 = scmp.lt.s32.totalorder %s19, 1
      %s210 = scalar_select %p209, %s19, 1
      %p211 = scmp.lt.s32.totalorder %s208, 1
      %s212 = scalar_select %p211, %s208, 1
      %s213 = smul.addr %s210, 4
      %s214 = sadd.s32 %s212, %s213
      %s215 = smul.addr %s214, 8
      %s216 = scalar_lea.vmem %s4, %s215
      %s217 = smul.u32 2, %s20
      %p218 = scmp.lt.s32.totalorder %s19, 1
      %s219 = scalar_select %p218, %s19, 1
      %p220 = scmp.lt.s32.totalorder %s217, 1
      %s221 = scalar_select %p220, %s217, 1
      %s222 = smul.addr %s219, 2
      %s223 = sadd.s32 %s221, %s222
      %s224 = smul.addr %s223, 4
      %s225 = scalar_lea.vmem %s0, %s224
      %s226 = smul.u32 2, %s20
      %s227 = smul.u32 2, %s20
      %p228 = scmp.lt.s32.totalorder %s19, 1
      %s229 = scalar_select %p228, %s19, 1
      %p230 = scmp.lt.s32.totalorder %s227, 1
      %s231 = scalar_select %p230, %s227, 1
      %s232 = smul.addr %s229, 4
      %s233 = sadd.s32 %s231, %s232
      %s234 = smul.addr %s233, 8
      %s235 = scalar_lea.vmem %s4, %s234
      %s236 = smul.u32 2, %s20
      %v237 = vld [vmem:[%s225] sm:$0xff]
      %v238 = vld [vmem:[%s1] sm:$0xff]
      %v239 = vld [vmem:[%s1 + $0x8] sm:$0xf]
      %241 = vst [vmem:[#allocation1] ss:$2 sm:$0xff] %v237
      %v242 = vld.sshfl [vmem:[#allocation1] sm:$0xff pattern:$0x75316420]
      %v243 = vld.sshfl [vmem:[#allocation1 + $0x8] sm:$0xff pattern:$0x75316420]
      %vm244 = vcmask 31744
      %v246 = vsel %vm244, %v238, 0
      %v249 = vsel %vm244, %v239, 0
      %vm251 = vcmask 1043456
      %v252 = vsel %vm251, %v242, 0
      %v254 = vsel %vm251, %v243, 0
      %256 = vmatpush.msra.mxu0 0.0
      %257 = vmatpush.msra.mxu0 0.0
      %258 = vmatpush.msra.mxu0 0.0
      %259 = vmatpush.msra.mxu0 0.0
      %260 = vmatpush.msra.mxu0 0.0
      %261 = vmatpush.msra.mxu0 0.0
      %262 = vmatpush.msra.mxu0 0.0
      %263 = vmatpush.msra.mxu0 0.0
      %264 = vmatpush.msra.mxu0 0.0
      %265 = vmatpush.msra.mxu0 0.0
      %266 = vmatpush.msra.mxu0 0.0
      %267 = vmatpush.msra.mxu0 0.0
      %268 = vmatpush.msra.mxu0 0.0
      %269 = vmatpush.msra.mxu0 0.0
      %270 = vmatpush.msra.mxu0 0.0
      %271 = vmatpush.msra.mxu0 %v252
      %272 = vmatmul.f32.gmra.mxu0 %v246
      %v273 = vpop.f32.mrf.mxu0
      %v274 = vadd.f32 0.0, %v273
      %275 = vmatmul.f32.gmra.mxu0 %v249
      %v276 = vpop.f32.mrf.mxu0
      %v277 = vadd.f32 0.0, %v276
      %278 = vdwg.mxu0
      %279 = vmatpush.msra.mxu0 0.0
      %280 = vmatpush.msra.mxu0 0.0
      %281 = vmatpush.msra.mxu0 0.0
      %282 = vmatpush.msra.mxu0 0.0
      %283 = vmatpush.msra.mxu0 0.0
      %284 = vmatpush.msra.mxu0 0.0
      %285 = vmatpush.msra.mxu0 0.0
      %286 = vmatpush.msra.mxu0 0.0
      %287 = vmatpush.msra.mxu0 0.0
      %288 = vmatpush.msra.mxu0 0.0
      %289 = vmatpush.msra.mxu0 0.0
      %290 = vmatpush.msra.mxu0 0.0
      %291 = vmatpush.msra.mxu0 0.0
      %292 = vmatpush.msra.mxu0 0.0
      %293 = vmatpush.msra.mxu0 0.0
      %294 = vmatpush.msra.mxu0 %v254
      %295 = vmatmul.f32.gmra.mxu0 %v246
      %v296 = vpop.f32.mrf.mxu0
      %v297 = vadd.f32 0.0, %v296
      %298 = vmatmul.f32.gmra.mxu0 %v249
      %v299 = vpop.f32.mrf.mxu0
      %v300 = vadd.f32 0.0, %v299
      %301 = vdwg.mxu0
      %v302 = vld [vmem:[%s2] sm:$0xff]
      %v303 = vld [vmem:[%s2 + $0x8] sm:$0xf]
      %305 = vset.pattern.permute.xlu0 0
      %306 = vperm.xlu0 %305, %v302
      %v307 = vpop.permute.xlu0 %306
      %310 = vset.pattern.permute.xlu0 0
      %311 = vperm.xlu0 %310, %v303
      %v312 = vpop.permute.xlu0 %311
      %v314 = vmul.f32 %v274, %v307
      %v315 = vmul.f32 %v297, %v307
      %v316 = vmul.f32 %v277, %v312
      %v317 = vmul.f32 %v300, %v312
      %v318 = vld [vmem:[%s3] sm:$0xff]
      %v319 = vld [vmem:[%s3 + $0x8] sm:$0xf]
      %321 = vset.pattern.permute.xlu0 0
      %322 = vperm.xlu0 %321, %v318
      %v323 = vpop.permute.xlu0 %322
      %326 = vset.pattern.permute.xlu0 0
      %327 = vperm.xlu0 %326, %v319
      %v328 = vpop.permute.xlu0 %327
      %v330 = vadd.f32 %v314, %v323
      %v331 = vadd.f32 %v315, %v323
      %v332 = vadd.f32 %v316, %v328
      %v333 = vadd.f32 %v317, %v328
      %v334 = vmax.f32 %v330, 0.0
      %v335 = vmax.f32 %v331, 0.0
      %v336 = vmax.f32 %v332, 0.0
      %v337 = vmax.f32 %v333, 0.0
      %338 = vst [vmem:[%s235] sm:$0xff] %v334
      %339 = vst [vmem:[%s235 + $0x8] sm:$0xff] %v335
      %340 = vst [vmem:[%s235 + $0x10] sm:$0xf] %v336
      %341 = vst [vmem:[%s235 + $0x18] sm:$0xf] %v337
      %s342 = smul.u32 2, %s20
      %p343 = scmp.lt.s32.totalorder %s19, 1
      %s344 = scalar_select %p343, %s19, 1
      %p345 = scmp.lt.s32.totalorder %s342, 1
      %s346 = scalar_select %p345, %s342, 1
      %s347 = smul.addr %s344, 4
      %s348 = sadd.s32 %s346, %s347
      %s349 = smul.addr %s348, 8
      %s350 = scalar_lea.vmem %s4, %s349
      // Predicated region
      $region37: #{rgpu_forward.9} parent=35 // pred_check
        %p351 = pneg %p138
      $region38: #{rgpu_forward.9} parent=35 // pred_check_branch
        %353 = sbr.rel (%p351) target = $region40
      $region39: #{rgpu_forward.9} parent=35 // pred_region
        %s354 = smul.u32 2, %s20
      $region40: #{rgpu_forward.9} parent=35 // pred_fallthru
        _
    $region36: #{rgpu_forward.9} parent=5 // pred_fallthru
      _
    %p355 = scmp.le.s32.totalorder 2, %s10
    // Predicated region
    $region41: #{rgpu_forward.9} parent=5 // pred_check
      %p356 = pneg %p355
    $region42: #{rgpu_forward.9} parent=5 // pred_check_branch
      %358 = sbr.rel (%p356) target = $region44
    $region43: #{rgpu_forward.9} parent=5 // pred_region
      %s359 = ssub.s32 %s10, 2
      // Predicated region
      $region45: #{rgpu_forward.9} parent=43 // pred_check
        %p360 = pneg %p144
      $region46: #{rgpu_forward.9} parent=43 // pred_check_branch
        %362 = sbr.rel (%p360) target = $region48
      $region47: #{rgpu_forward.9} parent=43 // pred_region
        %s363 = smul.u32 2, %s22
        %p364 = scmp.lt.s32.totalorder %s21, 1
        %s365 = scalar_select %p364, %s21, 1
        %p366 = scmp.lt.s32.totalorder %s363, 1
        %s367 = scalar_select %p366, %s363, 1
        %s368 = smul.addr %s365, 4
        %s369 = sadd.s32 %s367, %s368
        %s370 = smul.addr %s369, 8
        %s371 = scalar_lea.vmem %s4, %s370
      $region48: #{rgpu_forward.9} parent=43 // pred_fallthru
        _
    $region44: #{rgpu_forward.9} parent=5 // pred_fallthru
      _
  $region6: #{rgpu_forward.9} parent=0 // loop_footer
    %s14 = sadd.s32 1, %s10
  $region7: #{rgpu_forward.9} parent=0 // loop_footer_branch
    %9 = sbr.rel target = $region3
  $region8: #{rgpu_forward.9} parent=0 // loop_exit
    _

// kernel: rgpu_forward.10
$region0: #{rgpu_forward.10}
  #allocation0 [shape = 'u32[]', space=smem, size = 0x4, offset = 0x4, fixed_abs, tag = 'smem constant byte address 0x4 - core index']
  #allocation1 [shape = 'u32[72,128]{1,0:T(1,128)}', space=vmem, size = 0x9000, scoped, tag = 'internal scratch']
  %s0 = inlined_call_operand.vmem [shape: f32[2,18,256], index: 0, kind: input, shape index: {}]
  %s1 = inlined_call_operand.vmem [shape: f32[6,18], index: 1, kind: input, shape index: {}]
  %s2 = inlined_call_operand.vmem [shape: f32[6,1], index: 2, kind: input, shape index: {}]
  %s3 = inlined_call_operand.vmem [shape: f32[6,1], index: 3, kind: input, shape index: {}]
  %s4 = inlined_call_operand.vmem [shape: f32[2,6,256], index: 4, kind: output, shape index: {}]
  %s5 = sld [smem:[#allocation0]]
  $region49: #{rgpu_forward.10} parent=0
    _
  %s7 = ssub.s32 1, %s5
  %s8 = scalar_select 0, %s7, %s5
  loop: start=0, step=1, limit=4
  $region2: #{rgpu_forward.10} parent=0 // loop_pre_header
    _
  $region3: #{rgpu_forward.10} parent=0 // loop_header
    %s10 = sphi 0, %s14
    %p11 = scmp.ge.s32.totalorder %s10, 4
    %s17 = sphi 0, %s29
    %s18 = sphi 0, %s25
    %s19 = sphi 0, %s17
    %s20 = sphi 0, %s18
    %s21 = sphi 0, %s19
    %s22 = sphi 0, %s20
    %s34 = sphi 0, %s36
    %s37 = sphi 0, %s34
    %s38 = sphi 0, %s37
    %s54 = sphi 0, %s38
    %s58 = sphi 0, %s58
    %s60 = sphi 0, %s58
    %s61 = sphi 0, %s60
    %s75 = sphi 0, %s61
    %s79 = sphi 0, %s79
    %s81 = sphi 0, %s79
    %s82 = sphi 0, %s81
    %s96 = sphi 0, %s82
    %s100 = sphi 0, %s100
    %s102 = sphi 0, %s100
    %s103 = sphi 0, %s102
    %s117 = sphi 0, %s103
    %s125 = sphi 0, %s127
    %s128 = sphi 0, %s125
    %s129 = sphi 0, %s128
    %s145 = sphi 0, %s129
  $region4: #{rgpu_forward.10} parent=0 // loop_header_branch
    %13 = sbr.rel (%p11) target = $region8
  $region5: #{rgpu_forward.10} parent=0 // loop_body
    %s15 = ssub.s32 %s10, 1
    %s16 = ssub.s32 %s10, 2
    %s23 = sadd.s32 1, %s18
    %p24 = scmp.ge.s32.totalorder %s23, 1
    %s25 = scalar_select %p24, 0, %s23
    %s26 = sadd.s32 1, %s17
    %s27 = scalar_select %p24, %s26, %s17
    %p28 = scmp.ge.s32.totalorder %s27, 2
    %s29 = scalar_select %p28, 0, %s27
    %s30 = ssub.s32 %s17, %s29
    %s31 = ssub.s32 %s18, %s25
    %s32 = sor.u32 %s30, %s31
    %p33 = scmp.eq.s32.totalorder %s32, 0
    %s35 = sadd.s32 %s34, 1
    %s36 = scalar_select %p33, %s34, %s35
    %p39 = pneg %p33
    %p40 = scmp.eq.s32.totalorder %s10, 1
    %p41 = por %p39, %p40
    %p42 = scmp.ne.s32.totalorder %s34, %s37
    %p43 = scmp.eq.s32.totalorder %s10, 0
    %p44 = por %p42, %p43
    %p45 = scmp.ne.s32.totalorder %s34, %s37
    %p46 = scmp.eq.s32.totalorder %s15, 1
    %p47 = por %p45, %p46
    %p48 = scmp.ne.s32.totalorder %s37, %s38
    %p49 = scmp.eq.s32.totalorder %s15, 0
    %p50 = por %p48, %p49
    %p51 = scmp.ne.s32.totalorder %s37, %s38
    %p52 = scmp.eq.s32.totalorder %s16, 1
    %p53 = por %p51, %p52
    %p55 = scmp.ne.s32.totalorder %s38, %s54
    %p56 = scmp.eq.s32.totalorder %s16, 0
    %p57 = por %p55, %p56
    %s59 = sadd.s32 %s58, 1
    %p62 = scmp.eq.s32.totalorder %s10, 1
    %p63 = scmp.ne.s32.totalorder %s58, %s60
    %p64 = scmp.eq.s32.totalorder %s10, 0
    %p65 = por %p63, %p64
    %p66 = scmp.ne.s32.totalorder %s58, %s60
    %p67 = scmp.eq.s32.totalorder %s15, 1
    %p68 = por %p66, %p67
    %p69 = scmp.ne.s32.totalorder %s60, %s61
    %p70 = scmp.eq.s32.totalorder %s15, 0
    %p71 = por %p69, %p70
    %p72 = scmp.ne.s32.totalorder %s60, %s61
    %p73 = scmp.eq.s32.totalorder %s16, 1
    %p74 = por %p72, %p73
    %p76 = scmp.ne.s32.totalorder %s61, %s75
    %p77 = scmp.eq.s32.totalorder %s16, 0
    %p78 = por %p76, %p77
    %s80 = sadd.s32 %s79, 1
    %p83 = scmp.eq.s32.totalorder %s10, 1
    %p84 = scmp.ne.s32.totalorder %s79, %s81
    %p85 = scmp.eq.s32.totalorder %s10, 0
    %p86 = por %p84, %p85
    %p87 = scmp.ne.s32.totalorder %s79, %s81
    %p88 = scmp.eq.s32.totalorder %s15, 1
    %p89 = por %p87, %p88
    %p90 = scmp.ne.s32.totalorder %s81, %s82
    %p91 = scmp.eq.s32.totalorder %s15, 0
    %p92 = por %p90, %p91
    %p93 = scmp.ne.s32.totalorder %s81, %s82
    %p94 = scmp.eq.s32.totalorder %s16, 1
    %p95 = por %p93, %p94
    %p97 = scmp.ne.s32.totalorder %s82, %s96
    %p98 = scmp.eq.s32.totalorder %s16, 0
    %p99 = por %p97, %p98
    %s101 = sadd.s32 %s100, 1
    %p104 = scmp.eq.s32.totalorder %s10, 1
    %p105 = scmp.ne.s32.totalorder %s100, %s102
    %p106 = scmp.eq.s32.totalorder %s10, 0
    %p107 = por %p105, %p106
    %p108 = scmp.ne.s32.totalorder %s100, %s102
    %p109 = scmp.eq.s32.totalorder %s15, 1
    %p110 = por %p108, %p109
    %p111 = scmp.ne.s32.totalorder %s102, %s103
    %p112 = scmp.eq.s32.totalorder %s15, 0
    %p113 = por %p111, %p112
    %p114 = scmp.ne.s32.totalorder %s102, %s103
    %p115 = scmp.eq.s32.totalorder %s16, 1
    %p116 = por %p114, %p115
    %p118 = scmp.ne.s32.totalorder %s103, %s117
    %p119 = scmp.eq.s32.totalorder %s16, 0
    %p120 = por %p118, %p119
    %s121 = ssub.s32 %s17, %s29
    %s122 = ssub.s32 %s18, %s25
    %s123 = sor.u32 %s121, %s122
    %p124 = scmp.eq.s32.totalorder %s123, 0
    %s126 = sadd.s32 %s125, 1
    %s127 = scalar_select %p124, %s125, %s126
    %p130 = pneg %p124
    %p131 = scmp.eq.s32.totalorder %s10, 1
    %p132 = por %p130, %p131
    %p133 = scmp.ne.s32.totalorder %s125, %s128
    %p134 = scmp.eq.s32.totalorder %s10, 0
    %p135 = por %p133, %p134
    %p136 = scmp.ne.s32.totalorder %s125, %s128
    %p137 = scmp.eq.s32.totalorder %s15, 1
    %p138 = por %p136, %p137
    %p139 = scmp.ne.s32.totalorder %s128, %s129
    %p140 = scmp.eq.s32.totalorder %s15, 0
    %p141 = por %p139, %p140
    %p142 = scmp.ne.s32.totalorder %s128, %s129
    %p143 = scmp.eq.s32.totalorder %s16, 1
    %p144 = por %p142, %p143
    %p146 = scmp.ne.s32.totalorder %s129, %s145
    %p147 = scmp.eq.s32.totalorder %s16, 0
    %p148 = por %p146, %p147
    %p149 = scmp.le.s32.totalorder 1, %s10
    %p150 = scmp.lt.s32.totalorder %s10, 3
    %p151 = pnand %p149, %p150
    %p152 = pneg %p151
    // Predicated region
    $region9: #{rgpu_forward.10} parent=5 // pred_check
      _
    $region10: #{rgpu_forward.10} parent=5 // pred_check_branch
      %154 = sbr.rel (%p151) target = $region12
    $region11: #{rgpu_forward.10} parent=5 // pred_region
      %s155 = ssub.s32 %s10, 1
      // Predicated region
      $region13: #{rgpu_forward.10} parent=11 // pred_check
        %p156 = pneg %p71
      $region14: #{rgpu_forward.10} parent=11 // pred_check_branch
        %158 = sbr.rel (%p156) target = $region16
      $region15: #{rgpu_forward.10} parent=11 // pred_region
        _
      $region16: #{rgpu_forward.10} parent=11 // pred_fallthru
        _
      // Predicated region
      $region17: #{rgpu_forward.10} parent=11 // pred_check
        %p159 = pneg %p92
      $region18: #{rgpu_forward.10} parent=11 // pred_check_branch
        %161 = sbr.rel (%p159) target = $region20
      $region19: #{rgpu_forward.10} parent=11 // pred_region
        _
      $region20: #{rgpu_forward.10} parent=11 // pred_fallthru
        _
      // Predicated region
      $region21: #{rgpu_forward.10} parent=11 // pred_check
        %p162 = pneg %p113
      $region22: #{rgpu_forward.10} parent=11 // pred_check_branch
        %164 = sbr.rel (%p162) target = $region24
      $region23: #{rgpu_forward.10} parent=11 // pred_region
        _
      $region24: #{rgpu_forward.10} parent=11 // pred_fallthru
        _
    $region12: #{rgpu_forward.10} parent=5 // pred_fallthru
      _
    %p165 = scmp.lt.s32.totalorder %s10, 2
    // Predicated region
    $region25: #{rgpu_forward.10} parent=5 // pred_check
      %p166 = pneg %p165
    $region26: #{rgpu_forward.10} parent=5 // pred_check_branch
      %168 = sbr.rel (%p166) target = $region28
    $region27: #{rgpu_forward.10} parent=5 // pred_region
      // Predicated region
      $region29: #{rgpu_forward.10} parent=27 // pred_check
        %p169 = pneg %p44
      $region30: #{rgpu_forward.10} parent=27 // pred_check_branch
        %171 = sbr.rel (%p169) target = $region32
      $region31: #{rgpu_forward.10} parent=27 // pred_region
        %s172 = smul.u32 2, %s18
        %p173 = scmp.lt.s32.totalorder %s17, 1
        %s174 = scalar_select %p173, %s17, 1
        %p175 = scmp.lt.s32.totalorder %s172, 1
        %s176 = scalar_select %p175, %s172, 1
        %s177 = smul.addr %s174, 6
        %s178 = sadd.s32 %s176, %s177
        %s179 = smul.addr %s178, 8
        %s180 = scalar_lea.vmem %s0, %s179
        %s181 = smul.u32 2, %s18
      $region32: #{rgpu_forward.10} parent=27 // pred_fallthru
        _
    $region28: #{rgpu_forward.10} parent=5 // pred_fallthru
      _
    %p182 = scmp.le.s32.totalorder 1, %s10
    %p183 = scmp.lt.s32.totalorder %s10, 3
    %p184 = pnand %p182, %p183
    %p185 = pneg %p184
    // Predicated region
    $region33: #{rgpu_forward.10} parent=5 // pred_check
      _
    $region34: #{rgpu_forward.10} parent=5 // pred_check_branch
      %187 = sbr.rel (%p184) target = $region36
    $region35: #{rgpu_forward.10} parent=5 // pred_region
      %s188 = ssub.s32 %s10, 1
      %s189 = smul.u32 2, %s20
      %p190 = scmp.lt.s32.totalorder %s19, 1
      %s191 = scalar_select %p190, %s19, 1
      %p192 = scmp.lt.s32.totalorder %s189, 1
      %s193 = scalar_select %p192, %s189, 1
      %s194 = smul.addr %s191, 6
      %s195 = sadd.s32 %s193, %s194
      %s196 = smul.addr %s195, 8
      %s197 = scalar_lea.vmem %s0, %s196
      %p198 = pneg %p50
      %p199 = pneg %p47
      %p200 = pneg %p71
      %p201 = pneg %p68
      %p202 = pneg %p92
      %p203 = pneg %p89
      %p204 = pneg %p113
      %p205 = pneg %p110
      %p206 = pneg %p141
      %p207 = pneg %p138
      %s208 = smul.u32 2, %s20
      %p209 = scmp.lt.s32.totalorder %s19, 1
      %s210 = scalar_select %p209, %s19, 1
      %p211 = scmp.lt.s32.totalorder %s208, 1
      %s212 = scalar_select %p211, %s208, 1
      %s213 = smul.addr %s210, 2
      %s214 = sadd.s32 %s212, %s213
      %s215 = smul.addr %s214, 8
      %s216 = scalar_lea.vmem %s4, %s215
      %s217 = smul.u32 2, %s20
      %p218 = scmp.lt.s32.totalorder %s19, 1
      %s219 = scalar_select %p218, %s19, 1
      %p220 = scmp.lt.s32.totalorder %s217, 1
      %s221 = scalar_select %p220, %s217, 1
      %s222 = smul.addr %s219, 6
      %s223 = sadd.s32 %s221, %s222
      %s224 = smul.addr %s223, 8
      %s225 = scalar_lea.vmem %s0, %s224
      %s226 = smul.u32 2, %s20
      %s227 = smul.u32 2, %s20
      %p228 = scmp.lt.s32.totalorder %s19, 1
      %s229 = scalar_select %p228, %s19, 1
      %p230 = scmp.lt.s32.totalorder %s227, 1
      %s231 = scalar_select %p230, %s227, 1
      %s232 = smul.addr %s229, 2
      %s233 = sadd.s32 %s231, %s232
      %s234 = smul.addr %s233, 8
      %s235 = scalar_lea.vmem %s4, %s234
      %s236 = smul.u32 2, %s20
      %v237 = vld [vmem:[%s225] sm:$0xff]
      %v238 = vld [vmem:[%s225 + $0x8] sm:$0xff]
      %v239 = vld [vmem:[%s225 + $0x10] sm:$0xff]
      %v240 = vld [vmem:[%s225 + $0x18] sm:$0xff]
      %v241 = vld [vmem:[%s225 + $0x20] sm:$0x3]
      %v242 = vld [vmem:[%s225 + $0x28] sm:$0x3]
      %v243 = vld [vmem:[%s1] sm:$0x3f]
      %vm244 = vcmask 146432
      %v246 = vsel %vm244, %v243, 0
      %vm248 = vcmask 1041408
      %v250 = vsel %vm248, %v241, 0
      %v253 = vsel %vm248, %v242, 0
      %255 = vmatpush.msra.mxu0 0.0
      %256 = vmatpush.msra.mxu0 0.0
      %257 = vmatpush.msra.mxu0 0.0
      %258 = vmatpush.msra.mxu0 0.0
      %259 = vmatpush.msra.mxu0 0.0
      %260 = vmatpush.msra.mxu0 0.0
      %261 = vmatpush.msra.mxu0 0.0
      %262 = vmatpush.msra.mxu0 0.0
      %263 = vmatpush.msra.mxu0 0.0
      %264 = vmatpush.msra.mxu0 0.0
      %265 = vmatpush.msra.mxu0 0.0
      %266 = vmatpush.msra.mxu0 0.0
      %267 = vmatpush.msra.mxu0 0.0
      %268 = vmatpush.msra.mxu0 %v250
      %269 = vmatpush.msra.mxu0 %v239
      %270 = vmatpush.msra.mxu0 %v237
      %271 = vmatmul.f32.gmra.mxu0 %v246
      %v272 = vpop.f32.mrf.mxu0
      %v273 = vadd.f32 0.0, %v272
      %274 = vdwg.mxu0
      %275 = vmatpush.msra.mxu0 0.0
      %276 = vmatpush.msra.mxu0 0.0
      %277 = vmatpush.msra.mxu0 0.0
      %278 = vmatpush.msra.mxu0 0.0
      %279 = vmatpush.msra.mxu0 0.0
      %280 = vmatpush.msra.mxu0 0.0
      %281 = vmatpush.msra.mxu0 0.0
      %282 = vmatpush.msra.mxu0 0.0
      %283 = vmatpush.msra.mxu0 0.0
      %284 = vmatpush.msra.mxu0 0.0
      %285 = vmatpush.msra.mxu0 0.0
      %286 = vmatpush.msra.mxu0 0.0
      %287 = vmatpush.msra.mxu0 0.0
      %288 = vmatpush.msra.mxu0 %v253
      %289 = vmatpush.msra.mxu0 %v240
      %290 = vmatpush.msra.mxu0 %v238
      %291 = vmatmul.f32.gmra.mxu0 %v246
      %v292 = vpop.f32.mrf.mxu0
      %v293 = vadd.f32 0.0, %v292
      %294 = vdwg.mxu0
      %v295 = vld [vmem:[%s2] sm:$0x3f]
      %297 = vset.pattern.permute.xlu0 0
      %298 = vperm.xlu0 %297, %v295
      %v299 = vpop.permute.xlu0 %298
      %v301 = vmul.f32 %v273, %v299
      %v302 = vmul.f32 %v293, %v299
      %v303 = vld [vmem:[%s3] sm:$0x3f]
      %305 = vset.pattern.permute.xlu0 0
      %306 = vperm.xlu0 %305, %v303
      %v307 = vpop.permute.xlu0 %306
      %v309 = vadd.f32 %v301, %v307
      %v310 = vadd.f32 %v302, %v307
      %v311 = vmax.f32 %v309, 0.0
      %v312 = vmax.f32 %v310, 0.0
      %313 = vst [vmem:[%s235] sm:$0x3f] %v311
      %314 = vst [vmem:[%s235 + $0x8] sm:$0x3f] %v312
      %s315 = smul.u32 2, %s20
      %p316 = scmp.lt.s32.totalorder %s19, 1
      %s317 = scalar_select %p316, %s19, 1
      %p318 = scmp.lt.s32.totalorder %s315, 1
      %s319 = scalar_select %p318, %s315, 1
      %s320 = smul.addr %s317, 2
      %s321 = sadd.s32 %s319, %s320
      %s322 = smul.addr %s321, 8
      %s323 = scalar_lea.vmem %s4, %s322
      // Predicated region
      $region37: #{rgpu_forward.10} parent=35 // pred_check
        %p324 = pneg %p138
      $region38: #{rgpu_forward.10} parent=35 // pred_check_branch
        %326 = sbr.rel (%p324) target = $region40
      $region39: #{rgpu_forward.10} parent=35 // pred_region
        %s327 = smul.u32 2, %s20
      $region40: #{rgpu_forward.10} parent=35 // pred_fallthru
        _
    $region36: #{rgpu_forward.10} parent=5 // pred_fallthru
      _
    %p328 = scmp.le.s32.totalorder 2, %s10
    // Predicated region
    $region41: #{rgpu_forward.10} parent=5 // pred_check
      %p329 = pneg %p328
    $region42: #{rgpu_forward.10} parent=5 // pred_check_branch
      %331 = sbr.rel (%p329) target = $region44
    $region43: #{rgpu_forward.10} parent=5 // pred_region
      %s332 = ssub.s32 %s10, 2
      // Predicated region
      $region45: #{rgpu_forward.10} parent=43 // pred_check
        %p333 = pneg %p144
      $region46: #{rgpu_forward.10} parent=43 // pred_check_branch
        %335 = sbr.rel (%p333) target = $region48
      $region47: #{rgpu_forward.10} parent=43 // pred_region
        %s336 = smul.u32 2, %s22
        %p337 = scmp.lt.s32.totalorder %s21, 1
        %s338 = scalar_select %p337, %s21, 1
        %p339 = scmp.lt.s32.totalorder %s336, 1
        %s340 = scalar_select %p339, %s336, 1
        %s341 = smul.addr %s338, 2
        %s342 = sadd.s32 %s340, %s341
        %s343 = smul.addr %s342, 8
        %s344 = scalar_lea.vmem %s4, %s343
      $region48: #{rgpu_forward.10} parent=43 // pred_fallthru
        _
    $region44: #{rgpu_forward.10} parent=5 // pred_fallthru
      _
  $region6: #{rgpu_forward.10} parent=0 // loop_footer
    %s14 = sadd.s32 1, %s10
  $region7: #{rgpu_forward.10} parent=0 // loop_footer_branch
    %9 = sbr.rel target = $region3
  $region8: #{rgpu_forward.10} parent=0 // loop_exit
    _

// kernel: rgpu_forward.11
$region0: #{rgpu_forward.11}
  #allocation0 [shape = 'u32[]', space=smem, size = 0x4, offset = 0x4, fixed_abs, tag = 'smem constant byte address 0x4 - core index']
  #allocation1 [shape = 'u32[72,128]{1,0:T(1,128)}', space=vmem, size = 0x9000, scoped, tag = 'internal scratch']
  %s0 = inlined_call_operand.vmem [shape: f32[2,36,256], index: 0, kind: input, shape index: {}]
  %s1 = inlined_call_operand.vmem [shape: f32[6,36], index: 1, kind: input, shape index: {}]
  %s2 = inlined_call_operand.vmem [shape: f32[6,1], index: 2, kind: input, shape index: {}]
  %s3 = inlined_call_operand.vmem [shape: f32[6,1], index: 3, kind: input, shape index: {}]
  %s4 = inlined_call_operand.vmem [shape: f32[2,6,256], index: 4, kind: output, shape index: {}]
  %s5 = sld [smem:[#allocation0]]
  $region49: #{rgpu_forward.11} parent=0
    _
  %s7 = ssub.s32 1, %s5
  %s8 = scalar_select 0, %s7, %s5
  loop: start=0, step=1, limit=4
  $region2: #{rgpu_forward.11} parent=0 // loop_pre_header
    _
  $region3: #{rgpu_forward.11} parent=0 // loop_header
    %s10 = sphi 0, %s14
    %p11 = scmp.ge.s32.totalorder %s10, 4
    %s17 = sphi 0, %s29
    %s18 = sphi 0, %s25
    %s19 = sphi 0, %s17
    %s20 = sphi 0, %s18
    %s21 = sphi 0, %s19
    %s22 = sphi 0, %s20
    %s34 = sphi 0, %s36
    %s37 = sphi 0, %s34
    %s38 = sphi 0, %s37
    %s54 = sphi 0, %s38
    %s58 = sphi 0, %s58
    %s60 = sphi 0, %s58
    %s61 = sphi 0, %s60
    %s75 = sphi 0, %s61
    %s79 = sphi 0, %s79
    %s81 = sphi 0, %s79
    %s82 = sphi 0, %s81
    %s96 = sphi 0, %s82
    %s100 = sphi 0, %s100
    %s102 = sphi 0, %s100
    %s103 = sphi 0, %s102
    %s117 = sphi 0, %s103
    %s125 = sphi 0, %s127
    %s128 = sphi 0, %s125
    %s129 = sphi 0, %s128
    %s145 = sphi 0, %s129
  $region4: #{rgpu_forward.11} parent=0 // loop_header_branch
    %13 = sbr.rel (%p11) target = $region8
  $region5: #{rgpu_forward.11} parent=0 // loop_body
    %s15 = ssub.s32 %s10, 1
    %s16 = ssub.s32 %s10, 2
    %s23 = sadd.s32 1, %s18
    %p24 = scmp.ge.s32.totalorder %s23, 1
    %s25 = scalar_select %p24, 0, %s23
    %s26 = sadd.s32 1, %s17
    %s27 = scalar_select %p24, %s26, %s17
    %p28 = scmp.ge.s32.totalorder %s27, 2
    %s29 = scalar_select %p28, 0, %s27
    %s30 = ssub.s32 %s17, %s29
    %s31 = ssub.s32 %s18, %s25
    %s32 = sor.u32 %s30, %s31
    %p33 = scmp.eq.s32.totalorder %s32, 0
    %s35 = sadd.s32 %s34, 1
    %s36 = scalar_select %p33, %s34, %s35
    %p39 = pneg %p33
    %p40 = scmp.eq.s32.totalorder %s10, 1
    %p41 = por %p39, %p40
    %p42 = scmp.ne.s32.totalorder %s34, %s37
    %p43 = scmp.eq.s32.totalorder %s10, 0
    %p44 = por %p42, %p43
    %p45 = scmp.ne.s32.totalorder %s34, %s37
    %p46 = scmp.eq.s32.totalorder %s15, 1
    %p47 = por %p45, %p46
    %p48 = scmp.ne.s32.totalorder %s37, %s38
    %p49 = scmp.eq.s32.totalorder %s15, 0
    %p50 = por %p48, %p49
    %p51 = scmp.ne.s32.totalorder %s37, %s38
    %p52 = scmp.eq.s32.totalorder %s16, 1
    %p53 = por %p51, %p52
    %p55 = scmp.ne.s32.totalorder %s38, %s54
    %p56 = scmp.eq.s32.totalorder %s16, 0
    %p57 = por %p55, %p56
    %s59 = sadd.s32 %s58, 1
    %p62 = scmp.eq.s32.totalorder %s10, 1
    %p63 = scmp.ne.s32.totalorder %s58, %s60
    %p64 = scmp.eq.s32.totalorder %s10, 0
    %p65 = por %p63, %p64
    %p66 = scmp.ne.s32.totalorder %s58, %s60
    %p67 = scmp.eq.s32.totalorder %s15, 1
    %p68 = por %p66, %p67
    %p69 = scmp.ne.s32.totalorder %s60, %s61
    %p70 = scmp.eq.s32.totalorder %s15, 0
    %p71 = por %p69, %p70
    %p72 = scmp.ne.s32.totalorder %s60, %s61
    %p73 = scmp.eq.s32.totalorder %s16, 1
    %p74 = por %p72, %p73
    %p76 = scmp.ne.s32.totalorder %s61, %s75
    %p77 = scmp.eq.s32.totalorder %s16, 0
    %p78 = por %p76, %p77
    %s80 = sadd.s32 %s79, 1
    %p83 = scmp.eq.s32.totalorder %s10, 1
    %p84 = scmp.ne.s32.totalorder %s79, %s81
    %p85 = scmp.eq.s32.totalorder %s10, 0
    %p86 = por %p84, %p85
    %p87 = scmp.ne.s32.totalorder %s79, %s81
    %p88 = scmp.eq.s32.totalorder %s15, 1
    %p89 = por %p87, %p88
    %p90 = scmp.ne.s32.totalorder %s81, %s82
    %p91 = scmp.eq.s32.totalorder %s15, 0
    %p92 = por %p90, %p91
    %p93 = scmp.ne.s32.totalorder %s81, %s82
    %p94 = scmp.eq.s32.totalorder %s16, 1
    %p95 = por %p93, %p94
    %p97 = scmp.ne.s32.totalorder %s82, %s96
    %p98 = scmp.eq.s32.totalorder %s16, 0
    %p99 = por %p97, %p98
    %s101 = sadd.s32 %s100, 1
    %p104 = scmp.eq.s32.totalorder %s10, 1
    %p105 = scmp.ne.s32.totalorder %s100, %s102
    %p106 = scmp.eq.s32.totalorder %s10, 0
    %p107 = por %p105, %p106
    %p108 = scmp.ne.s32.totalorder %s100, %s102
    %p109 = scmp.eq.s32.totalorder %s15, 1
    %p110 = por %p108, %p109
    %p111 = scmp.ne.s32.totalorder %s102, %s103
    %p112 = scmp.eq.s32.totalorder %s15, 0
    %p113 = por %p111, %p112
    %p114 = scmp.ne.s32.totalorder %s102, %s103
    %p115 = scmp.eq.s32.totalorder %s16, 1
    %p116 = por %p114, %p115
    %p118 = scmp.ne.s32.totalorder %s103, %s117
    %p119 = scmp.eq.s32.totalorder %s16, 0
    %p120 = por %p118, %p119
    %s121 = ssub.s32 %s17, %s29
    %s122 = ssub.s32 %s18, %s25
    %s123 = sor.u32 %s121, %s122
    %p124 = scmp.eq.s32.totalorder %s123, 0
    %s126 = sadd.s32 %s125, 1
    %s127 = scalar_select %p124, %s125, %s126
    %p130 = pneg %p124
    %p131 = scmp.eq.s32.totalorder %s10, 1
    %p132 = por %p130, %p131
    %p133 = scmp.ne.s32.totalorder %s125, %s128
    %p134 = scmp.eq.s32.totalorder %s10, 0
    %p135 = por %p133, %p134
    %p136 = scmp.ne.s32.totalorder %s125, %s128
    %p137 = scmp.eq.s32.totalorder %s15, 1
    %p138 = por %p136, %p137
    %p139 = scmp.ne.s32.totalorder %s128, %s129
    %p140 = scmp.eq.s32.totalorder %s15, 0
    %p141 = por %p139, %p140
    %p142 = scmp.ne.s32.totalorder %s128, %s129
    %p143 = scmp.eq.s32.totalorder %s16, 1
    %p144 = por %p142, %p143
    %p146 = scmp.ne.s32.totalorder %s129, %s145
    %p147 = scmp.eq.s32.totalorder %s16, 0
    %p148 = por %p146, %p147
    %p149 = scmp.le.s32.totalorder 1, %s10
    %p150 = scmp.lt.s32.totalorder %s10, 3
    %p151 = pnand %p149, %p150
    %p152 = pneg %p151
    // Predicated region
    $region9: #{rgpu_forward.11} parent=5 // pred_check
      _
    $region10: #{rgpu_forward.11} parent=5 // pred_check_branch
      %154 = sbr.rel (%p151) target = $region12
    $region11: #{rgpu_forward.11} parent=5 // pred_region
      %s155 = ssub.s32 %s10, 1
      // Predicated region
      $region13: #{rgpu_forward.11} parent=11 // pred_check
        %p156 = pneg %p71
      $region14: #{rgpu_forward.11} parent=11 // pred_check_branch
        %158 = sbr.rel (%p156) target = $region16
      $region15: #{rgpu_forward.11} parent=11 // pred_region
        _
      $region16: #{rgpu_forward.11} parent=11 // pred_fallthru
        _
      // Predicated region
      $region17: #{rgpu_forward.11} parent=11 // pred_check
        %p159 = pneg %p92
      $region18: #{rgpu_forward.11} parent=11 // pred_check_branch
        %161 = sbr.rel (%p159) target = $region20
      $region19: #{rgpu_forward.11} parent=11 // pred_region
        _
      $region20: #{rgpu_forward.11} parent=11 // pred_fallthru
        _
      // Predicated region
      $region21: #{rgpu_forward.11} parent=11 // pred_check
        %p162 = pneg %p113
      $region22: #{rgpu_forward.11} parent=11 // pred_check_branch
        %164 = sbr.rel (%p162) target = $region24
      $region23: #{rgpu_forward.11} parent=11 // pred_region
        _
      $region24: #{rgpu_forward.11} parent=11 // pred_fallthru
        _
    $region12: #{rgpu_forward.11} parent=5 // pred_fallthru
      _
    %p165 = scmp.lt.s32.totalorder %s10, 2
    // Predicated region
    $region25: #{rgpu_forward.11} parent=5 // pred_check
      %p166 = pneg %p165
    $region26: #{rgpu_forward.11} parent=5 // pred_check_branch
      %168 = sbr.rel (%p166) target = $region28
    $region27: #{rgpu_forward.11} parent=5 // pred_region
      // Predicated region
      $region29: #{rgpu_forward.11} parent=27 // pred_check
        %p169 = pneg %p44
      $region30: #{rgpu_forward.11} parent=27 // pred_check_branch
        %171 = sbr.rel (%p169) target = $region32
      $region31: #{rgpu_forward.11} parent=27 // pred_region
        %s172 = smul.u32 2, %s18
        %p173 = scmp.lt.s32.totalorder %s17, 1
        %s174 = scalar_select %p173, %s17, 1
        %p175 = scmp.lt.s32.totalorder %s172, 1
        %s176 = scalar_select %p175, %s172, 1
        %s177 = smul.addr %s174, 10
        %s178 = sadd.s32 %s176, %s177
        %s179 = smul.addr %s178, 8
        %s180 = scalar_lea.vmem %s0, %s179
        %s181 = smul.u32 2, %s18
      $region32: #{rgpu_forward.11} parent=27 // pred_fallthru
        _
    $region28: #{rgpu_forward.11} parent=5 // pred_fallthru
      _
    %p182 = scmp.le.s32.totalorder 1, %s10
    %p183 = scmp.lt.s32.totalorder %s10, 3
    %p184 = pnand %p182, %p183
    %p185 = pneg %p184
    // Predicated region
    $region33: #{rgpu_forward.11} parent=5 // pred_check
      _
    $region34: #{rgpu_forward.11} parent=5 // pred_check_branch
      %187 = sbr.rel (%p184) target = $region36
    $region35: #{rgpu_forward.11} parent=5 // pred_region
      %s188 = ssub.s32 %s10, 1
      %s189 = smul.u32 2, %s20
      %p190 = scmp.lt.s32.totalorder %s19, 1
      %s191 = scalar_select %p190, %s19, 1
      %p192 = scmp.lt.s32.totalorder %s189, 1
      %s193 = scalar_select %p192, %s189, 1
      %s194 = smul.addr %s191, 10
      %s195 = sadd.s32 %s193, %s194
      %s196 = smul.addr %s195, 8
      %s197 = scalar_lea.vmem %s0, %s196
      %p198 = pneg %p50
      %p199 = pneg %p47
      %p200 = pneg %p71
      %p201 = pneg %p68
      %p202 = pneg %p92
      %p203 = pneg %p89
      %p204 = pneg %p113
      %p205 = pneg %p110
      %p206 = pneg %p141
      %p207 = pneg %p138
      %s208 = smul.u32 2, %s20
      %p209 = scmp.lt.s32.totalorder %s19, 1
      %s210 = scalar_select %p209, %s19, 1
      %p211 = scmp.lt.s32.totalorder %s208, 1
      %s212 = scalar_select %p211, %s208, 1
      %s213 = smul.addr %s210, 2
      %s214 = sadd.s32 %s212, %s213
      %s215 = smul.addr %s214, 8
      %s216 = scalar_lea.vmem %s4, %s215
      %s217 = smul.u32 2, %s20
      %p218 = scmp.lt.s32.totalorder %s19, 1
      %s219 = scalar_select %p218, %s19, 1
      %p220 = scmp.lt.s32.totalorder %s217, 1
      %s221 = scalar_select %p220, %s217, 1
      %s222 = smul.addr %s219, 10
      %s223 = sadd.s32 %s221, %s222
      %s224 = smul.addr %s223, 8
      %s225 = scalar_lea.vmem %s0, %s224
      %s226 = smul.u32 2, %s20
      %s227 = smul.u32 2, %s20
      %p228 = scmp.lt.s32.totalorder %s19, 1
      %s229 = scalar_select %p228, %s19, 1
      %p230 = scmp.lt.s32.totalorder %s227, 1
      %s231 = scalar_select %p230, %s227, 1
      %s232 = smul.addr %s229, 2
      %s233 = sadd.s32 %s231, %s232
      %s234 = smul.addr %s233, 8
      %s235 = scalar_lea.vmem %s4, %s234
      %s236 = smul.u32 2, %s20
      %v237 = vld [vmem:[%s225] sm:$0xff]
      %v238 = vld [vmem:[%s225 + $0x8] sm:$0xff]
      %v239 = vld [vmem:[%s225 + $0x10] sm:$0xff]
      %v240 = vld [vmem:[%s225 + $0x18] sm:$0xff]
      %v241 = vld [vmem:[%s225 + $0x20] sm:$0xff]
      %v242 = vld [vmem:[%s225 + $0x28] sm:$0xff]
      %v243 = vld [vmem:[%s225 + $0x30] sm:$0xff]
      %v244 = vld [vmem:[%s225 + $0x38] sm:$0xff]
      %v245 = vld [vmem:[%s225 + $0x40] sm:$0xf]
      %v246 = vld [vmem:[%s225 + $0x48] sm:$0xf]
      %v247 = vld [vmem:[%s1] sm:$0x3f]
      %vm248 = vcmask 293888
      %v250 = vsel %vm248, %v247, 0
      %vm252 = vcmask 1043456
      %v254 = vsel %vm252, %v245, 0
      %v257 = vsel %vm252, %v246, 0
      %259 = vmatpush.msra.mxu0 0.0
      %260 = vmatpush.msra.mxu0 0.0
      %261 = vmatpush.msra.mxu0 0.0
      %262 = vmatpush.msra.mxu0 0.0
      %263 = vmatpush.msra.mxu0 0.0
      %264 = vmatpush.msra.mxu0 0.0
      %265 = vmatpush.msra.mxu0 0.0
      %266 = vmatpush.msra.mxu0 0.0
      %267 = vmatpush.msra.mxu0 0.0
      %268 = vmatpush.msra.mxu0 0.0
      %269 = vmatpush.msra.mxu0 0.0
      %270 = vmatpush.msra.mxu0 %v254
      %271 = vmatpush.msra.mxu0 %v243
      %272 = vmatpush.msra.mxu0 %v241
      %273 = vmatpush.msra.mxu0 %v239
      %274 = vmatpush.msra.mxu0 %v237
      %275 = vmatmul.f32.gmra.mxu0 %v250
      %v276 = vpop.f32.mrf.mxu0
      %v277 = vadd.f32 0.0, %v276
      %278 = vdwg.mxu0
      %279 = vmatpush.msra.mxu0 0.0
      %280 = vmatpush.msra.mxu0 0.0
      %281 = vmatpush.msra.mxu0 0.0
      %282 = vmatpush.msra.mxu0 0.0
      %283 = vmatpush.msra.mxu0 0.0
      %284 = vmatpush.msra.mxu0 0.0
      %285 = vmatpush.msra.mxu0 0.0
      %286 = vmatpush.msra.mxu0 0.0
      %287 = vmatpush.msra.mxu0 0.0
      %288 = vmatpush.msra.mxu0 0.0
      %289 = vmatpush.msra.mxu0 0.0
      %290 = vmatpush.msra.mxu0 %v257
      %291 = vmatpush.msra.mxu0 %v244
      %292 = vmatpush.msra.mxu0 %v242
      %293 = vmatpush.msra.mxu0 %v240
      %294 = vmatpush.msra.mxu0 %v238
      %295 = vmatmul.f32.gmra.mxu0 %v250
      %v296 = vpop.f32.mrf.mxu0
      %v297 = vadd.f32 0.0, %v296
      %298 = vdwg.mxu0
      %v299 = vld [vmem:[%s2] sm:$0x3f]
      %301 = vset.pattern.permute.xlu0 0
      %302 = vperm.xlu0 %301, %v299
      %v303 = vpop.permute.xlu0 %302
      %v305 = vmul.f32 %v277, %v303
      %v306 = vmul.f32 %v297, %v303
      %v307 = vld [vmem:[%s3] sm:$0x3f]
      %309 = vset.pattern.permute.xlu0 0
      %310 = vperm.xlu0 %309, %v307
      %v311 = vpop.permute.xlu0 %310
      %v313 = vadd.f32 %v305, %v311
      %v314 = vadd.f32 %v306, %v311
      %v315 = vmax.f32 %v313, 0.0
      %v316 = vmax.f32 %v314, 0.0
      %317 = vst [vmem:[%s235] sm:$0x3f] %v315
      %318 = vst [vmem:[%s235 + $0x8] sm:$0x3f] %v316
      %s319 = smul.u32 2, %s20
      %p320 = scmp.lt.s32.totalorder %s19, 1
      %s321 = scalar_select %p320, %s19, 1
      %p322 = scmp.lt.s32.totalorder %s319, 1
      %s323 = scalar_select %p322, %s319, 1
      %s324 = smul.addr %s321, 2
      %s325 = sadd.s32 %s323, %s324
      %s326 = smul.addr %s325, 8
      %s327 = scalar_lea.vmem %s4, %s326
      // Predicated region
      $region37: #{rgpu_forward.11} parent=35 // pred_check
        %p328 = pneg %p138
      $region38: #{rgpu_forward.11} parent=35 // pred_check_branch
        %330 = sbr.rel (%p328) target = $region40
      $region39: #{rgpu_forward.11} parent=35 // pred_region
        %s331 = smul.u32 2, %s20
      $region40: #{rgpu_forward.11} parent=35 // pred_fallthru
        _
    $region36: #{rgpu_forward.11} parent=5 // pred_fallthru
      _
    %p332 = scmp.le.s32.totalorder 2, %s10
    // Predicated region
    $region41: #{rgpu_forward.11} parent=5 // pred_check
      %p333 = pneg %p332
    $region42: #{rgpu_forward.11} parent=5 // pred_check_branch
      %335 = sbr.rel (%p333) target = $region44
    $region43: #{rgpu_forward.11} parent=5 // pred_region
      %s336 = ssub.s32 %s10, 2
      // Predicated region
      $region45: #{rgpu_forward.11} parent=43 // pred_check
        %p337 = pneg %p144
      $region46: #{rgpu_forward.11} parent=43 // pred_check_branch
        %339 = sbr.rel (%p337) target = $region48
      $region47: #{rgpu_forward.11} parent=43 // pred_region
        %s340 = smul.u32 2, %s22
        %p341 = scmp.lt.s32.totalorder %s21, 1
        %s342 = scalar_select %p341, %s21, 1
        %p343 = scmp.lt.s32.totalorder %s340, 1
        %s344 = scalar_select %p343, %s340, 1
        %s345 = smul.addr %s342, 2
        %s346 = sadd.s32 %s344, %s345
        %s347 = smul.addr %s346, 8
        %s348 = scalar_lea.vmem %s4, %s347
      $region48: #{rgpu_forward.11} parent=43 // pred_fallthru
        _
    $region44: #{rgpu_forward.11} parent=5 // pred_fallthru
      _
  $region6: #{rgpu_forward.11} parent=0 // loop_footer
    %s14 = sadd.s32 1, %s10
  $region7: #{rgpu_forward.11} parent=0 // loop_footer_branch
    %9 = sbr.rel target = $region3
  $region8: #{rgpu_forward.11} parent=0 // loop_exit
    _

// kernel: rgpu_forward.15
$region0: #{rgpu_forward.15}
  #allocation0 [shape = 'u32[]', space=smem, size = 0x4, offset = 0x4, fixed_abs, tag = 'smem constant byte address 0x4 - core index']
  #allocation1 [shape = 'u32[72,128]{1,0:T(1,128)}', space=vmem, size = 0x9000, scoped, tag = 'internal scratch']
  %s0 = inlined_call_operand.vmem [shape: f32[2,36,256], index: 0, kind: input, shape index: {}]
  %s1 = inlined_call_operand.vmem [shape: f32[4,36], index: 1, kind: input, shape index: {}]
  %s2 = inlined_call_operand.vmem [shape: f32[4,1], index: 2, kind: input, shape index: {}]
  %s3 = inlined_call_operand.vmem [shape: f32[4,1], index: 3, kind: input, shape index: {}]
  %s4 = inlined_call_operand.vmem [shape: f32[2,4,256], index: 4, kind: output, shape index: {}]
  %s5 = sld [smem:[#allocation0]]
  $region49: #{rgpu_forward.15} parent=0
    _
  %s7 = ssub.s32 1, %s5
  %s8 = scalar_select 0, %s7, %s5
  loop: start=0, step=1, limit=4
  $region2: #{rgpu_forward.15} parent=0 // loop_pre_header
    _
  $region3: #{rgpu_forward.15} parent=0 // loop_header
    %s10 = sphi 0, %s14
    %p11 = scmp.ge.s32.totalorder %s10, 4
    %s17 = sphi 0, %s29
    %s18 = sphi 0, %s25
    %s19 = sphi 0, %s17
    %s20 = sphi 0, %s18
    %s21 = sphi 0, %s19
    %s22 = sphi 0, %s20
    %s34 = sphi 0, %s36
    %s37 = sphi 0, %s34
    %s38 = sphi 0, %s37
    %s54 = sphi 0, %s38
    %s58 = sphi 0, %s58
    %s60 = sphi 0, %s58
    %s61 = sphi 0, %s60
    %s75 = sphi 0, %s61
    %s79 = sphi 0, %s79
    %s81 = sphi 0, %s79
    %s82 = sphi 0, %s81
    %s96 = sphi 0, %s82
    %s100 = sphi 0, %s100
    %s102 = sphi 0, %s100
    %s103 = sphi 0, %s102
    %s117 = sphi 0, %s103
    %s125 = sphi 0, %s127
    %s128 = sphi 0, %s125
    %s129 = sphi 0, %s128
    %s145 = sphi 0, %s129
  $region4: #{rgpu_forward.15} parent=0 // loop_header_branch
    %13 = sbr.rel (%p11) target = $region8
  $region5: #{rgpu_forward.15} parent=0 // loop_body
    %s15 = ssub.s32 %s10, 1
    %s16 = ssub.s32 %s10, 2
    %s23 = sadd.s32 1, %s18
    %p24 = scmp.ge.s32.totalorder %s23, 1
    %s25 = scalar_select %p24, 0, %s23
    %s26 = sadd.s32 1, %s17
    %s27 = scalar_select %p24, %s26, %s17
    %p28 = scmp.ge.s32.totalorder %s27, 2
    %s29 = scalar_select %p28, 0, %s27
    %s30 = ssub.s32 %s17, %s29
    %s31 = ssub.s32 %s18, %s25
    %s32 = sor.u32 %s30, %s31
    %p33 = scmp.eq.s32.totalorder %s32, 0
    %s35 = sadd.s32 %s34, 1
    %s36 = scalar_select %p33, %s34, %s35
    %p39 = pneg %p33
    %p40 = scmp.eq.s32.totalorder %s10, 1
    %p41 = por %p39, %p40
    %p42 = scmp.ne.s32.totalorder %s34, %s37
    %p43 = scmp.eq.s32.totalorder %s10, 0
    %p44 = por %p42, %p43
    %p45 = scmp.ne.s32.totalorder %s34, %s37
    %p46 = scmp.eq.s32.totalorder %s15, 1
    %p47 = por %p45, %p46
    %p48 = scmp.ne.s32.totalorder %s37, %s38
    %p49 = scmp.eq.s32.totalorder %s15, 0
    %p50 = por %p48, %p49
    %p51 = scmp.ne.s32.totalorder %s37, %s38
    %p52 = scmp.eq.s32.totalorder %s16, 1
    %p53 = por %p51, %p52
    %p55 = scmp.ne.s32.totalorder %s38, %s54
    %p56 = scmp.eq.s32.totalorder %s16, 0
    %p57 = por %p55, %p56
    %s59 = sadd.s32 %s58, 1
    %p62 = scmp.eq.s32.totalorder %s10, 1
    %p63 = scmp.ne.s32.totalorder %s58, %s60
    %p64 = scmp.eq.s32.totalorder %s10, 0
    %p65 = por %p63, %p64
    %p66 = scmp.ne.s32.totalorder %s58, %s60
    %p67 = scmp.eq.s32.totalorder %s15, 1
    %p68 = por %p66, %p67
    %p69 = scmp.ne.s32.totalorder %s60, %s61
    %p70 = scmp.eq.s32.totalorder %s15, 0
    %p71 = por %p69, %p70
    %p72 = scmp.ne.s32.totalorder %s60, %s61
    %p73 = scmp.eq.s32.totalorder %s16, 1
    %p74 = por %p72, %p73
    %p76 = scmp.ne.s32.totalorder %s61, %s75
    %p77 = scmp.eq.s32.totalorder %s16, 0
    %p78 = por %p76, %p77
    %s80 = sadd.s32 %s79, 1
    %p83 = scmp.eq.s32.totalorder %s10, 1
    %p84 = scmp.ne.s32.totalorder %s79, %s81
    %p85 = scmp.eq.s32.totalorder %s10, 0
    %p86 = por %p84, %p85
    %p87 = scmp.ne.s32.totalorder %s79, %s81
    %p88 = scmp.eq.s32.totalorder %s15, 1
    %p89 = por %p87, %p88
    %p90 = scmp.ne.s32.totalorder %s81, %s82
    %p91 = scmp.eq.s32.totalorder %s15, 0
    %p92 = por %p90, %p91
    %p93 = scmp.ne.s32.totalorder %s81, %s82
    %p94 = scmp.eq.s32.totalorder %s16, 1
    %p95 = por %p93, %p94
    %p97 = scmp.ne.s32.totalorder %s82, %s96
    %p98 = scmp.eq.s32.totalorder %s16, 0
    %p99 = por %p97, %p98
    %s101 = sadd.s32 %s100, 1
    %p104 = scmp.eq.s32.totalorder %s10, 1
    %p105 = scmp.ne.s32.totalorder %s100, %s102
    %p106 = scmp.eq.s32.totalorder %s10, 0
    %p107 = por %p105, %p106
    %p108 = scmp.ne.s32.totalorder %s100, %s102
    %p109 = scmp.eq.s32.totalorder %s15, 1
    %p110 = por %p108, %p109
    %p111 = scmp.ne.s32.totalorder %s102, %s103
    %p112 = scmp.eq.s32.totalorder %s15, 0
    %p113 = por %p111, %p112
    %p114 = scmp.ne.s32.totalorder %s102, %s103
    %p115 = scmp.eq.s32.totalorder %s16, 1
    %p116 = por %p114, %p115
    %p118 = scmp.ne.s32.totalorder %s103, %s117
    %p119 = scmp.eq.s32.totalorder %s16, 0
    %p120 = por %p118, %p119
    %s121 = ssub.s32 %s17, %s29
    %s122 = ssub.s32 %s18, %s25
    %s123 = sor.u32 %s121, %s122
    %p124 = scmp.eq.s32.totalorder %s123, 0
    %s126 = sadd.s32 %s125, 1
    %s127 = scalar_select %p124, %s125, %s126
    %p130 = pneg %p124
    %p131 = scmp.eq.s32.totalorder %s10, 1
    %p132 = por %p130, %p131
    %p133 = scmp.ne.s32.totalorder %s125, %s128
    %p134 = scmp.eq.s32.totalorder %s10, 0
    %p135 = por %p133, %p134
    %p136 = scmp.ne.s32.totalorder %s125, %s128
    %p137 = scmp.eq.s32.totalorder %s15, 1
    %p138 = por %p136, %p137
    %p139 = scmp.ne.s32.totalorder %s128, %s129
    %p140 = scmp.eq.s32.totalorder %s15, 0
    %p141 = por %p139, %p140
    %p142 = scmp.ne.s32.totalorder %s128, %s129
    %p143 = scmp.eq.s32.totalorder %s16, 1
    %p144 = por %p142, %p143
    %p146 = scmp.ne.s32.totalorder %s129, %s145
    %p147 = scmp.eq.s32.totalorder %s16, 0
    %p148 = por %p146, %p147
    %p149 = scmp.le.s32.totalorder 1, %s10
    %p150 = scmp.lt.s32.totalorder %s10, 3
    %p151 = pnand %p149, %p150
    %p152 = pneg %p151
    // Predicated region
    $region9: #{rgpu_forward.15} parent=5 // pred_check
      _
    $region10: #{rgpu_forward.15} parent=5 // pred_check_branch
      %154 = sbr.rel (%p151) target = $region12
    $region11: #{rgpu_forward.15} parent=5 // pred_region
      %s155 = ssub.s32 %s10, 1
      // Predicated region
      $region13: #{rgpu_forward.15} parent=11 // pred_check
        %p156 = pneg %p71
      $region14: #{rgpu_forward.15} parent=11 // pred_check_branch
        %158 = sbr.rel (%p156) target = $region16
      $region15: #{rgpu_forward.15} parent=11 // pred_region
        _
      $region16: #{rgpu_forward.15} parent=11 // pred_fallthru
        _
      // Predicated region
      $region17: #{rgpu_forward.15} parent=11 // pred_check
        %p159 = pneg %p92
      $region18: #{rgpu_forward.15} parent=11 // pred_check_branch
        %161 = sbr.rel (%p159) target = $region20
      $region19: #{rgpu_forward.15} parent=11 // pred_region
        _
      $region20: #{rgpu_forward.15} parent=11 // pred_fallthru
        _
      // Predicated region
      $region21: #{rgpu_forward.15} parent=11 // pred_check
        %p162 = pneg %p113
      $region22: #{rgpu_forward.15} parent=11 // pred_check_branch
        %164 = sbr.rel (%p162) target = $region24
      $region23: #{rgpu_forward.15} parent=11 // pred_region
        _
      $region24: #{rgpu_forward.15} parent=11 // pred_fallthru
        _
    $region12: #{rgpu_forward.15} parent=5 // pred_fallthru
      _
    %p165 = scmp.lt.s32.totalorder %s10, 2
    // Predicated region
    $region25: #{rgpu_forward.15} parent=5 // pred_check
      %p166 = pneg %p165
    $region26: #{rgpu_forward.15} parent=5 // pred_check_branch
      %168 = sbr.rel (%p166) target = $region28
    $region27: #{rgpu_forward.15} parent=5 // pred_region
      // Predicated region
      $region29: #{rgpu_forward.15} parent=27 // pred_check
        %p169 = pneg %p44
      $region30: #{rgpu_forward.15} parent=27 // pred_check_branch
        %171 = sbr.rel (%p169) target = $region32
      $region31: #{rgpu_forward.15} parent=27 // pred_region
        %s172 = smul.u32 2, %s18
        %p173 = scmp.lt.s32.totalorder %s17, 1
        %s174 = scalar_select %p173, %s17, 1
        %p175 = scmp.lt.s32.totalorder %s172, 1
        %s176 = scalar_select %p175, %s172, 1
        %s177 = smul.addr %s174, 10
        %s178 = sadd.s32 %s176, %s177
        %s179 = smul.addr %s178, 8
        %s180 = scalar_lea.vmem %s0, %s179
        %s181 = smul.u32 2, %s18
      $region32: #{rgpu_forward.15} parent=27 // pred_fallthru
        _
    $region28: #{rgpu_forward.15} parent=5 // pred_fallthru
      _
    %p182 = scmp.le.s32.totalorder 1, %s10
    %p183 = scmp.lt.s32.totalorder %s10, 3
    %p184 = pnand %p182, %p183
    %p185 = pneg %p184
    // Predicated region
    $region33: #{rgpu_forward.15} parent=5 // pred_check
      _
    $region34: #{rgpu_forward.15} parent=5 // pred_check_branch
      %187 = sbr.rel (%p184) target = $region36
    $region35: #{rgpu_forward.15} parent=5 // pred_region
      %s188 = ssub.s32 %s10, 1
      %s189 = smul.u32 2, %s20
      %p190 = scmp.lt.s32.totalorder %s19, 1
      %s191 = scalar_select %p190, %s19, 1
      %p192 = scmp.lt.s32.totalorder %s189, 1
      %s193 = scalar_select %p192, %s189, 1
      %s194 = smul.addr %s191, 10
      %s195 = sadd.s32 %s193, %s194
      %s196 = smul.addr %s195, 8
      %s197 = scalar_lea.vmem %s0, %s196
      %p198 = pneg %p50
      %p199 = pneg %p47
      %p200 = pneg %p71
      %p201 = pneg %p68
      %p202 = pneg %p92
      %p203 = pneg %p89
      %p204 = pneg %p113
      %p205 = pneg %p110
      %p206 = pneg %p141
      %p207 = pneg %p138
      %s208 = smul.u32 2, %s20
      %p209 = scmp.lt.s32.totalorder %s19, 1
      %s210 = scalar_select %p209, %s19, 1
      %p211 = scmp.lt.s32.totalorder %s208, 1
      %s212 = scalar_select %p211, %s208, 1
      %s213 = smul.addr %s210, 2
      %s214 = sadd.s32 %s212, %s213
      %s215 = smul.addr %s214, 4
      %s216 = scalar_lea.vmem %s4, %s215
      %s217 = smul.u32 2, %s20
      %p218 = scmp.lt.s32.totalorder %s19, 1
      %s219 = scalar_select %p218, %s19, 1
      %p220 = scmp.lt.s32.totalorder %s217, 1
      %s221 = scalar_select %p220, %s217, 1
      %s222 = smul.addr %s219, 10
      %s223 = sadd.s32 %s221, %s222
      %s224 = smul.addr %s223, 8
      %s225 = scalar_lea.vmem %s0, %s224
      %s226 = smul.u32 2, %s20
      %s227 = smul.u32 2, %s20
      %p228 = scmp.lt.s32.totalorder %s19, 1
      %s229 = scalar_select %p228, %s19, 1
      %p230 = scmp.lt.s32.totalorder %s227, 1
      %s231 = scalar_select %p230, %s227, 1
      %s232 = smul.addr %s229, 2
      %s233 = sadd.s32 %s231, %s232
      %s234 = smul.addr %s233, 4
      %s235 = scalar_lea.vmem %s4, %s234
      %s236 = smul.u32 2, %s20
      %v237 = vld [vmem:[%s225] sm:$0xff]
      %v238 = vld [vmem:[%s225 + $0x8] sm:$0xff]
      %v239 = vld [vmem:[%s225 + $0x10] sm:$0xff]
      %v240 = vld [vmem:[%s225 + $0x18] sm:$0xff]
      %v241 = vld [vmem:[%s225 + $0x20] sm:$0xff]
      %v242 = vld [vmem:[%s225 + $0x28] sm:$0xff]
      %v243 = vld [vmem:[%s225 + $0x30] sm:$0xff]
      %v244 = vld [vmem:[%s225 + $0x38] sm:$0xff]
      %v245 = vld [vmem:[%s225 + $0x40] sm:$0xf]
      %v246 = vld [vmem:[%s225 + $0x48] sm:$0xf]
      %v247 = vld [vmem:[%s1] sm:$0xf]
      %vm248 = vcmask 293888
      %v250 = vsel %vm248, %v247, 0
      %vm252 = vcmask 1043456
      %v254 = vsel %vm252, %v245, 0
      %v257 = vsel %vm252, %v246, 0
      %259 = vmatpush.msra.mxu0 0.0
      %260 = vmatpush.msra.mxu0 0.0
      %261 = vmatpush.msra.mxu0 0.0
      %262 = vmatpush.msra.mxu0 0.0
      %263 = vmatpush.msra.mxu0 0.0
      %264 = vmatpush.msra.mxu0 0.0
      %265 = vmatpush.msra.mxu0 0.0
      %266 = vmatpush.msra.mxu0 0.0
      %267 = vmatpush.msra.mxu0 0.0
      %268 = vmatpush.msra.mxu0 0.0
      %269 = vmatpush.msra.mxu0 0.0
      %270 = vmatpush.msra.mxu0 %v254
      %271 = vmatpush.msra.mxu0 %v243
      %272 = vmatpush.msra.mxu0 %v241
      %273 = vmatpush.msra.mxu0 %v239
      %274 = vmatpush.msra.mxu0 %v237
      %275 = vmatmul.f32.gmra.mxu0 %v250
      %v276 = vpop.f32.mrf.mxu0
      %v277 = vadd.f32 0.0, %v276
      %278 = vdwg.mxu0
      %279 = vmatpush.msra.mxu0 0.0
      %280 = vmatpush.msra.mxu0 0.0
      %281 = vmatpush.msra.mxu0 0.0
      %282 = vmatpush.msra.mxu0 0.0
      %283 = vmatpush.msra.mxu0 0.0
      %284 = vmatpush.msra.mxu0 0.0
      %285 = vmatpush.msra.mxu0 0.0
      %286 = vmatpush.msra.mxu0 0.0
      %287 = vmatpush.msra.mxu0 0.0
      %288 = vmatpush.msra.mxu0 0.0
      %289 = vmatpush.msra.mxu0 0.0
      %290 = vmatpush.msra.mxu0 %v257
      %291 = vmatpush.msra.mxu0 %v244
      %292 = vmatpush.msra.mxu0 %v242
      %293 = vmatpush.msra.mxu0 %v240
      %294 = vmatpush.msra.mxu0 %v238
      %295 = vmatmul.f32.gmra.mxu0 %v250
      %v296 = vpop.f32.mrf.mxu0
      %v297 = vadd.f32 0.0, %v296
      %298 = vdwg.mxu0
      %v299 = vld [vmem:[%s2] sm:$0xf]
      %301 = vset.pattern.permute.xlu0 0
      %302 = vperm.xlu0 %301, %v299
      %v303 = vpop.permute.xlu0 %302
      %v305 = vmul.f32 %v277, %v303
      %v306 = vmul.f32 %v297, %v303
      %v307 = vld [vmem:[%s3] sm:$0xf]
      %309 = vset.pattern.permute.xlu0 0
      %310 = vperm.xlu0 %309, %v307
      %v311 = vpop.permute.xlu0 %310
      %v313 = vadd.f32 %v305, %v311
      %v314 = vadd.f32 %v306, %v311
      %v315 = vmax.f32 %v313, 0.0
      %v316 = vmax.f32 %v314, 0.0
      %v319 = vrot.slane %v316, 4
      %v320 = vsel %vm252, %v315, %v319
      %322 = vst [vmem:[%s235] sm:$0xff] %v320
      %s323 = smul.u32 2, %s20
      %p324 = scmp.lt.s32.totalorder %s19, 1
      %s325 = scalar_select %p324, %s19, 1
      %p326 = scmp.lt.s32.totalorder %s323, 1
      %s327 = scalar_select %p326, %s323, 1
      %s328 = smul.addr %s325, 2
      %s329 = sadd.s32 %s327, %s328
      %s330 = smul.addr %s329, 4
      %s331 = scalar_lea.vmem %s4, %s330
      // Predicated region
      $region37: #{rgpu_forward.15} parent=35 // pred_check
        %p332 = pneg %p138
      $region38: #{rgpu_forward.15} parent=35 // pred_check_branch
        %334 = sbr.rel (%p332) target = $region40
      $region39: #{rgpu_forward.15} parent=35 // pred_region
        %s335 = smul.u32 2, %s20
      $region40: #{rgpu_forward.15} parent=35 // pred_fallthru
        _
    $region36: #{rgpu_forward.15} parent=5 // pred_fallthru
      _
    %p336 = scmp.le.s32.totalorder 2, %s10
    // Predicated region
    $region41: #{rgpu_forward.15} parent=5 // pred_check
      %p337 = pneg %p336
    $region42: #{rgpu_forward.15} parent=5 // pred_check_branch
      %339 = sbr.rel (%p337) target = $region44
    $region43: #{rgpu_forward.15} parent=5 // pred_region
      %s340 = ssub.s32 %s10, 2
      // Predicated region
      $region45: #{rgpu_forward.15} parent=43 // pred_check
        %p341 = pneg %p144
      $region46: #{rgpu_forward.15} parent=43 // pred_check_branch
        %343 = sbr.rel (%p341) target = $region48
      $region47: #{rgpu_forward.15} parent=43 // pred_region
        %s344 = smul.u32 2, %s22
        %p345 = scmp.lt.s32.totalorder %s21, 1
        %s346 = scalar_select %p345, %s21, 1
        %p347 = scmp.lt.s32.totalorder %s344, 1
        %s348 = scalar_select %p347, %s344, 1
        %s349 = smul.addr %s346, 2
        %s350 = sadd.s32 %s348, %s349
        %s351 = smul.addr %s350, 4
        %s352 = scalar_lea.vmem %s4, %s351
      $region48: #{rgpu_forward.15} parent=43 // pred_fallthru
        _
    $region44: #{rgpu_forward.15} parent=5 // pred_fallthru
      _
  $region6: #{rgpu_forward.15} parent=0 // loop_footer
    %s14 = sadd.s32 1, %s10
  $region7: #{rgpu_forward.15} parent=0 // loop_footer_branch
    %9 = sbr.rel target = $region3
  $region8: #{rgpu_forward.15} parent=0 // loop_exit
    _

// kernel: rgpu_forward.16
$region0: #{rgpu_forward.16}
  #allocation0 [shape = 'u32[]', space=smem, size = 0x4, offset = 0x4, fixed_abs, tag = 'smem constant byte address 0x4 - core index']
  #allocation1 [shape = 'u32[72,128]{1,0:T(1,128)}', space=vmem, size = 0x9000, scoped, tag = 'internal scratch']
  %s0 = inlined_call_operand.vmem [shape: f32[2,12,256], index: 0, kind: input, shape index: {}]
  %s1 = inlined_call_operand.vmem [shape: f32[2,12], index: 1, kind: input, shape index: {}]
  %s2 = inlined_call_operand.vmem [shape: f32[2,1], index: 2, kind: input, shape index: {}]
  %s3 = inlined_call_operand.vmem [shape: f32[12,2], index: 3, kind: input, shape index: {}]
  %s4 = inlined_call_operand.vmem [shape: f32[12,1], index: 4, kind: input, shape index: {}]
  %s5 = inlined_call_operand.vmem [shape: f32[2,12,1], index: 5, kind: output, shape index: {}]
  %s6 = sld [smem:[#allocation0]]
  $region53: #{rgpu_forward.16} parent=0
    _
  %s8 = ssub.s32 1, %s6
  %s9 = scalar_select 0, %s8, %s6
  loop: start=0, step=1, limit=4
  $region2: #{rgpu_forward.16} parent=0 // loop_pre_header
    _
  $region3: #{rgpu_forward.16} parent=0 // loop_header
    %s11 = sphi 0, %s15
    %p12 = scmp.ge.s32.totalorder %s11, 4
    %s21 = sphi 0, %s23
    %s24 = sphi 0, %s21
    %s25 = sphi 0, %s24
    %s41 = sphi 0, %s25
    %s45 = sphi 0, %s45
    %s47 = sphi 0, %s45
    %s48 = sphi 0, %s47
    %s62 = sphi 0, %s48
    %s66 = sphi 0, %s66
    %s68 = sphi 0, %s66
    %s69 = sphi 0, %s68
    %s83 = sphi 0, %s69
    %s87 = sphi 0, %s87
    %s89 = sphi 0, %s87
    %s90 = sphi 0, %s89
    %s104 = sphi 0, %s90
    %s108 = sphi 0, %s108
    %s110 = sphi 0, %s108
    %s111 = sphi 0, %s110
    %s125 = sphi 0, %s111
    %s131 = sphi 0, %s133
    %s134 = sphi 0, %s131
    %s135 = sphi 0, %s134
    %s151 = sphi 0, %s135
  $region4: #{rgpu_forward.16} parent=0 // loop_header_branch
    %14 = sbr.rel (%p12) target = $region8
  $region5: #{rgpu_forward.16} parent=0 // loop_body
    %s16 = ssub.s32 %s11, 1
    %s17 = ssub.s32 %s11, 2
    %s18 = sadd.s32 %s11, 1
    %s19 = ssub.s32 %s11, %s18
    %p20 = scmp.eq.s32.totalorder %s19, 0
    %s22 = sadd.s32 %s21, 1
    %s23 = scalar_select %p20, %s21, %s22
    %p26 = pneg %p20
    %p27 = scmp.eq.s32.totalorder %s11, 1
    %p28 = por %p26, %p27
    %p29 = scmp.ne.s32.totalorder %s21, %s24
    %p30 = scmp.eq.s32.totalorder %s11, 0
    %p31 = por %p29, %p30
    %p32 = scmp.ne.s32.totalorder %s21, %s24
    %p33 = scmp.eq.s32.totalorder %s16, 1
    %p34 = por %p32, %p33
    %p35 = scmp.ne.s32.totalorder %s24, %s25
    %p36 = scmp.eq.s32.totalorder %s16, 0
    %p37 = por %p35, %p36
    %p38 = scmp.ne.s32.totalorder %s24, %s25
    %p39 = scmp.eq.s32.totalorder %s17, 1
    %p40 = por %p38, %p39
    %p42 = scmp.ne.s32.totalorder %s25, %s41
    %p43 = scmp.eq.s32.totalorder %s17, 0
    %p44 = por %p42, %p43
    %s46 = sadd.s32 %s45, 1
    %p49 = scmp.eq.s32.totalorder %s11, 1
    %p50 = scmp.ne.s32.totalorder %s45, %s47
    %p51 = scmp.eq.s32.totalorder %s11, 0
    %p52 = por %p50, %p51
    %p53 = scmp.ne.s32.totalorder %s45, %s47
    %p54 = scmp.eq.s32.totalorder %s16, 1
    %p55 = por %p53, %p54
    %p56 = scmp.ne.s32.totalorder %s47, %s48
    %p57 = scmp.eq.s32.totalorder %s16, 0
    %p58 = por %p56, %p57
    %p59 = scmp.ne.s32.totalorder %s47, %s48
    %p60 = scmp.eq.s32.totalorder %s17, 1
    %p61 = por %p59, %p60
    %p63 = scmp.ne.s32.totalorder %s48, %s62
    %p64 = scmp.eq.s32.totalorder %s17, 0
    %p65 = por %p63, %p64
    %s67 = sadd.s32 %s66, 1
    %p70 = scmp.eq.s32.totalorder %s11, 1
    %p71 = scmp.ne.s32.totalorder %s66, %s68
    %p72 = scmp.eq.s32.totalorder %s11, 0
    %p73 = por %p71, %p72
    %p74 = scmp.ne.s32.totalorder %s66, %s68
    %p75 = scmp.eq.s32.totalorder %s16, 1
    %p76 = por %p74, %p75
    %p77 = scmp.ne.s32.totalorder %s68, %s69
    %p78 = scmp.eq.s32.totalorder %s16, 0
    %p79 = por %p77, %p78
    %p80 = scmp.ne.s32.totalorder %s68, %s69
    %p81 = scmp.eq.s32.totalorder %s17, 1
    %p82 = por %p80, %p81
    %p84 = scmp.ne.s32.totalorder %s69, %s83
    %p85 = scmp.eq.s32.totalorder %s17, 0
    %p86 = por %p84, %p85
    %s88 = sadd.s32 %s87, 1
    %p91 = scmp.eq.s32.totalorder %s11, 1
    %p92 = scmp.ne.s32.totalorder %s87, %s89
    %p93 = scmp.eq.s32.totalorder %s11, 0
    %p94 = por %p92, %p93
    %p95 = scmp.ne.s32.totalorder %s87, %s89
    %p96 = scmp.eq.s32.totalorder %s16, 1
    %p97 = por %p95, %p96
    %p98 = scmp.ne.s32.totalorder %s89, %s90
    %p99 = scmp.eq.s32.totalorder %s16, 0
    %p100 = por %p98, %p99
    %p101 = scmp.ne.s32.totalorder %s89, %s90
    %p102 = scmp.eq.s32.totalorder %s17, 1
    %p103 = por %p101, %p102
    %p105 = scmp.ne.s32.totalorder %s90, %s104
    %p106 = scmp.eq.s32.totalorder %s17, 0
    %p107 = por %p105, %p106
    %s109 = sadd.s32 %s108, 1
    %p112 = scmp.eq.s32.totalorder %s11, 1
    %p113 = scmp.ne.s32.totalorder %s108, %s110
    %p114 = scmp.eq.s32.totalorder %s11, 0
    %p115 = por %p113, %p114
    %p116 = scmp.ne.s32.totalorder %s108, %s110
    %p117 = scmp.eq.s32.totalorder %s16, 1
    %p118 = por %p116, %p117
    %p119 = scmp.ne.s32.totalorder %s110, %s111
    %p120 = scmp.eq.s32.totalorder %s16, 0
    %p121 = por %p119, %p120
    %p122 = scmp.ne.s32.totalorder %s110, %s111
    %p123 = scmp.eq.s32.totalorder %s17, 1
    %p124 = por %p122, %p123
    %p126 = scmp.ne.s32.totalorder %s111, %s125
    %p127 = scmp.eq.s32.totalorder %s17, 0
    %p128 = por %p126, %p127
    %s129 = ssub.s32 %s11, %s18
    %p130 = scmp.eq.s32.totalorder %s129, 0
    %s132 = sadd.s32 %s131, 1
    %s133 = scalar_select %p130, %s131, %s132
    %p136 = pneg %p130
    %p137 = scmp.eq.s32.totalorder %s11, 1
    %p138 = por %p136, %p137
    %p139 = scmp.ne.s32.totalorder %s131, %s134
    %p140 = scmp.eq.s32.totalorder %s11, 0
    %p141 = por %p139, %p140
    %p142 = scmp.ne.s32.totalorder %s131, %s134
    %p143 = scmp.eq.s32.totalorder %s16, 1
    %p144 = por %p142, %p143
    %p145 = scmp.ne.s32.totalorder %s134, %s135
    %p146 = scmp.eq.s32.totalorder %s16, 0
    %p147 = por %p145, %p146
    %p148 = scmp.ne.s32.totalorder %s134, %s135
    %p149 = scmp.eq.s32.totalorder %s17, 1
    %p150 = por %p148, %p149
    %p152 = scmp.ne.s32.totalorder %s135, %s151
    %p153 = scmp.eq.s32.totalorder %s17, 0
    %p154 = por %p152, %p153
    %p155 = scmp.le.s32.totalorder 1, %s11
    %p156 = scmp.lt.s32.totalorder %s11, 3
    %p157 = pnand %p155, %p156
    %p158 = pneg %p157
    // Predicated region
    $region9: #{rgpu_forward.16} parent=5 // pred_check
      _
    $region10: #{rgpu_forward.16} parent=5 // pred_check_branch
      %160 = sbr.rel (%p157) target = $region12
    $region11: #{rgpu_forward.16} parent=5 // pred_region
      %s161 = ssub.s32 %s11, 1
      // Predicated region
      $region13: #{rgpu_forward.16} parent=11 // pred_check
        %p162 = pneg %p58
      $region14: #{rgpu_forward.16} parent=11 // pred_check_branch
        %164 = sbr.rel (%p162) target = $region16
      $region15: #{rgpu_forward.16} parent=11 // pred_region
        _
      $region16: #{rgpu_forward.16} parent=11 // pred_fallthru
        _
      // Predicated region
      $region17: #{rgpu_forward.16} parent=11 // pred_check
        %p165 = pneg %p79
      $region18: #{rgpu_forward.16} parent=11 // pred_check_branch
        %167 = sbr.rel (%p165) target = $region20
      $region19: #{rgpu_forward.16} parent=11 // pred_region
        _
      $region20: #{rgpu_forward.16} parent=11 // pred_fallthru
        _
      // Predicated region
      $region21: #{rgpu_forward.16} parent=11 // pred_check
        %p168 = pneg %p100
      $region22: #{rgpu_forward.16} parent=11 // pred_check_branch
        %170 = sbr.rel (%p168) target = $region24
      $region23: #{rgpu_forward.16} parent=11 // pred_region
        _
      $region24: #{rgpu_forward.16} parent=11 // pred_fallthru
        _
      // Predicated region
      $region25: #{rgpu_forward.16} parent=11 // pred_check
        %p171 = pneg %p121
      $region26: #{rgpu_forward.16} parent=11 // pred_check_branch
        %173 = sbr.rel (%p171) target = $region28
      $region27: #{rgpu_forward.16} parent=11 // pred_region
        _
      $region28: #{rgpu_forward.16} parent=11 // pred_fallthru
        _
    $region12: #{rgpu_forward.16} parent=5 // pred_fallthru
      _
    %p174 = scmp.lt.s32.totalorder %s11, 2
    // Predicated region
    $region29: #{rgpu_forward.16} parent=5 // pred_check
      %p175 = pneg %p174
    $region30: #{rgpu_forward.16} parent=5 // pred_check_branch
      %177 = sbr.rel (%p175) target = $region32
    $region31: #{rgpu_forward.16} parent=5 // pred_region
      // Predicated region
      $region33: #{rgpu_forward.16} parent=31 // pred_check
        %p178 = pneg %p31
      $region34: #{rgpu_forward.16} parent=31 // pred_check_branch
        %180 = sbr.rel (%p178) target = $region36
      $region35: #{rgpu_forward.16} parent=31 // pred_region
        %p181 = scmp.lt.s32.totalorder %s11, 1
        %s182 = scalar_select %p181, %s11, 1
        %s183 = smul.addr %s182, 4
        %s184 = smul.addr %s183, 8
        %s185 = scalar_lea.vmem %s0, %s184
      $region36: #{rgpu_forward.16} parent=31 // pred_fallthru
        _
    $region32: #{rgpu_forward.16} parent=5 // pred_fallthru
      _
    %p186 = scmp.le.s32.totalorder 1, %s11
    %p187 = scmp.lt.s32.totalorder %s11, 3
    %p188 = pnand %p186, %p187
    %p189 = pneg %p188
    // Predicated region
    $region37: #{rgpu_forward.16} parent=5 // pred_check
      _
    $region38: #{rgpu_forward.16} parent=5 // pred_check_branch
      %191 = sbr.rel (%p188) target = $region40
    $region39: #{rgpu_forward.16} parent=5 // pred_region
      %s192 = ssub.s32 %s11, 1
      %p193 = scmp.lt.s32.totalorder %s16, 1
      %s194 = scalar_select %p193, %s16, 1
      %s195 = smul.addr %s194, 4
      %s196 = smul.addr %s195, 8
      %s197 = scalar_lea.vmem %s0, %s196
      %p198 = pneg %p37
      %p199 = pneg %p34
      %p200 = pneg %p58
      %p201 = pneg %p55
      %p202 = pneg %p79
      %p203 = pneg %p76
      %p204 = pneg %p100
      %p205 = pneg %p97
      %p206 = pneg %p121
      %p207 = pneg %p118
      %p208 = pneg %p147
      %p209 = pneg %p144
      %p210 = scmp.lt.s32.totalorder %s16, 1
      %s211 = scalar_select %p210, %s16, 1
      %s212 = smul.addr %s211, 2
      %s213 = smul.addr %s212, 8
      %s214 = scalar_lea.vmem %s5, %s213
      %p215 = scmp.lt.s32.totalorder %s16, 1
      %s216 = scalar_select %p215, %s16, 1
      %s217 = smul.addr %s216, 4
      %s218 = smul.addr %s217, 8
      %s219 = scalar_lea.vmem %s0, %s218
      %p220 = scmp.lt.s32.totalorder %s16, 1
      %s221 = scalar_select %p220, %s16, 1
      %s222 = smul.addr %s221, 2
      %s223 = smul.addr %s222, 8
      %s224 = scalar_lea.vmem %s5, %s223
      %v225 = vld [vmem:[%s219] sm:$0xff]
      %v226 = vld [vmem:[%s219 + $0x8] sm:$0xff]
      %v227 = vld [vmem:[%s219 + $0x10] sm:$0xf]
      %v228 = vld [vmem:[%s219 + $0x18] sm:$0xf]
      %v229 = vadd.f32 %v225, %v226
      %230 = vadd.xlane.f32.xlu0 %v229
      %v231 = vpop.xlane.xlu0 %230
      %vm232 = vcmask 1043456
      %v233 = vsel %vm232, %v227, 0.0
      %v234 = vsel %vm232, %v228, 0.0
      %v235 = vadd.f32 %v233, %v234
      %236 = vadd.xlane.f32.xlu0 %v235
      %v237 = vpop.xlane.xlu0 %236
      %v238 = vmul.f32 %v231, 0.00390625
      %v239 = vmul.f32 %v237, 0.00390625
      %v240 = vld [vmem:[%s1] sm:$0x3]
      %v241 = vld [vmem:[%s2] sm:$0x3]
      %vm242 = vcmask 97280
      %v244 = vsel %vm242, %v240, 0
      %v247 = vsel %vm232, %v239, 0
      %249 = vmatpush.msra.mxu0 0.0
      %250 = vmatpush.msra.mxu0 0.0
      %251 = vmatpush.msra.mxu0 0.0
      %252 = vmatpush.msra.mxu0 0.0
      %253 = vmatpush.msra.mxu0 0.0
      %254 = vmatpush.msra.mxu0 0.0
      %255 = vmatpush.msra.mxu0 0.0
      %256 = vmatpush.msra.mxu0 0.0
      %257 = vmatpush.msra.mxu0 0.0
      %258 = vmatpush.msra.mxu0 0.0
      %259 = vmatpush.msra.mxu0 0.0
      %260 = vmatpush.msra.mxu0 0.0
      %261 = vmatpush.msra.mxu0 0.0
      %262 = vmatpush.msra.mxu0 0.0
      %263 = vmatpush.msra.mxu0 %v247
      %264 = vmatpush.msra.mxu0 %v238
      %265 = vmatmul.f32.gmra.mxu0 %v244
      %v266 = vpop.f32.mrf.mxu0
      %v267 = vadd.f32 %v241, %v266
      %268 = vdwg.mxu0
      %v269 = vmax.f32 %v267, 0.0
      %v270 = vld [vmem:[%s3] sm:$0xff]
      %v271 = vld [vmem:[%s3 + $0x8] sm:$0xf]
      %v272 = vld [vmem:[%s4] sm:$0xff]
      %v273 = vld [vmem:[%s4 + $0x8] sm:$0xf]
      %vm274 = vcmask 15360
      %v276 = vsel %vm274, %v270, 0
      %v279 = vsel %vm274, %v271, 0
      %vm281 = vcmask 1041408
      %v283 = vsel %vm281, %v269, 0
      %285 = vmatpush.msra.mxu0 0.0
      %286 = vmatpush.msra.mxu0 0.0
      %287 = vmatpush.msra.mxu0 0.0
      %288 = vmatpush.msra.mxu0 0.0
      %289 = vmatpush.msra.mxu0 0.0
      %290 = vmatpush.msra.mxu0 0.0
      %291 = vmatpush.msra.mxu0 0.0
      %292 = vmatpush.msra.mxu0 0.0
      %293 = vmatpush.msra.mxu0 0.0
      %294 = vmatpush.msra.mxu0 0.0
      %295 = vmatpush.msra.mxu0 0.0
      %296 = vmatpush.msra.mxu0 0.0
      %297 = vmatpush.msra.mxu0 0.0
      %298 = vmatpush.msra.mxu0 0.0
      %299 = vmatpush.msra.mxu0 0.0
      %300 = vmatpush.msra.mxu0 %v283
      %301 = vmatmul.f32.gmra.mxu0 %v276
      %v302 = vpop.f32.mrf.mxu0
      %v303 = vadd.f32 %v272, %v302
      %304 = vmatmul.f32.gmra.mxu0 %v279
      %v305 = vpop.f32.mrf.mxu0
      %v306 = vadd.f32 %v273, %v305
      %307 = vdwg.mxu0
      %vm308 = vcmask 7168
      %v309 = vsel %vm308, %v303, -inf
      %vm310 = vcmask 3072
      %v311 = vsel %vm310, %v306, -inf
      %v312 = vmax.f32 %v309, %v311
      %v313 = vrot.slane %v312, 4
      %v314 = vmax.f32 %v312, %v313
      %v315 = vrot.slane %v314, 2
      %v316 = vmax.f32 %v314, %v315
      %v317 = vrot.slane %v316, 1
      %v318 = vmax.f32 %v316, %v317
      %v319 = vsub.f32 %v303, %v318
      %v320 = vsub.f32 %v306, %v318
      %v321 = vmul.f32 %v319, 1.442695
      %v322 = vpow.pop %v321
      %v323 = vmul.f32 %v320, 1.442695
      %v324 = vpow.pop %v323
      %v325 = vsel %vm308, %v322, 0.0
      %v326 = vsel %vm310, %v324, 0.0
      %v327 = vadd.f32 %v325, %v326
      %v328 = vrot.slane %v327, 4
      %v329 = vadd.f32 %v327, %v328
      %v330 = vrot.slane %v329, 2
      %v331 = vadd.f32 %v329, %v330
      %v332 = vrot.slane %v331, 1
      %v333 = vadd.f32 %v331, %v332
      %v334 = vrcp.pop %v333
      %v335 = vmul.f32 %v333, %v334
      %v336 = vsub.f32 1.0, %v335
      %v337 = vmul.f32 %v334, %v336
      %v338 = vadd.f32 %v334, %v337
      %vm339 = vweird.f32 %v333
      %vm340 = vweird.f32 %v334
      %vm341 = vmor %vm339, %vm340
      %v342 = vsel %vm341, %v334, %v338
      %v343 = vand.u32 2147483647, %v333
      %vm344 = vcmp.eq.f32.partialorder %v343, 8.507059e+37
      %v345 = vand.u32 %v333, 2147483648
      %v346 = vor.u32 1.1754944e-38, %v345
      %v347 = vsel %vm344, %v346, %v342
      %v348 = vmul.f32 %v322, %v347
      %v349 = vmul.f32 %v324, %v347
      %350 = vst.msk [vmem:[%s224] sm:$0xff] %vm308, %v348
      %351 = vst.msk [vmem:[%s224 + $0x8] sm:$0xf] %vm310, %v349
      %p352 = scmp.lt.s32.totalorder %s16, 1
      %s353 = scalar_select %p352, %s16, 1
      %s354 = smul.addr %s353, 2
      %s355 = smul.addr %s354, 8
      %s356 = scalar_lea.vmem %s5, %s355
      // Predicated region
      $region41: #{rgpu_forward.16} parent=39 // pred_check
        %p357 = pneg %p144
      $region42: #{rgpu_forward.16} parent=39 // pred_check_branch
        %359 = sbr.rel (%p357) target = $region44
      $region43: #{rgpu_forward.16} parent=39 // pred_region
        _
      $region44: #{rgpu_forward.16} parent=39 // pred_fallthru
        _
    $region40: #{rgpu_forward.16} parent=5 // pred_fallthru
      _
    %p360 = scmp.le.s32.totalorder 2, %s11
    // Predicated region
    $region45: #{rgpu_forward.16} parent=5 // pred_check
      %p361 = pneg %p360
    $region46: #{rgpu_forward.16} parent=5 // pred_check_branch
      %363 = sbr.rel (%p361) target = $region48
    $region47: #{rgpu_forward.16} parent=5 // pred_region
      %s364 = ssub.s32 %s11, 2
      // Predicated region
      $region49: #{rgpu_forward.16} parent=47 // pred_check
        %p365 = pneg %p150
      $region50: #{rgpu_forward.16} parent=47 // pred_check_branch
        %367 = sbr.rel (%p365) target = $region52
      $region51: #{rgpu_forward.16} parent=47 // pred_region
        %p368 = scmp.lt.s32.totalorder %s17, 1
        %s369 = scalar_select %p368, %s17, 1
        %s370 = smul.addr %s369, 2
        %s371 = smul.addr %s370, 8
        %s372 = scalar_lea.vmem %s5, %s371
      $region52: #{rgpu_forward.16} parent=47 // pred_fallthru
        _
    $region48: #{rgpu_forward.16} parent=5 // pred_fallthru
      _
  $region6: #{rgpu_forward.16} parent=0 // loop_footer
    %s15 = sadd.s32 1, %s11
  $region7: #{rgpu_forward.16} parent=0 // loop_footer_branch
    %10 = sbr.rel target = $region3
  $region8: #{rgpu_forward.16} parent=0 // loop_exit
    _

// kernel: rgpu_forward.17
$region0: #{rgpu_forward.17}
  #allocation0 [shape = 'u32[]', space=smem, size = 0x4, offset = 0x4, fixed_abs, tag = 'smem constant byte address 0x4 - core index']
  #allocation1 [shape = 'u32[72,128]{1,0:T(1,128)}', space=vmem, size = 0x9000, scoped, tag = 'internal scratch']
  %s0 = inlined_call_operand.vmem [shape: f32[2,108,256], index: 0, kind: input, shape index: {}]
  %s1 = inlined_call_operand.vmem [shape: f32[4,108], index: 1, kind: input, shape index: {}]
  %s2 = inlined_call_operand.vmem [shape: f32[4,1], index: 2, kind: input, shape index: {}]
  %s3 = inlined_call_operand.vmem [shape: f32[4,1], index: 3, kind: input, shape index: {}]
  %s4 = inlined_call_operand.vmem [shape: f32[2,108,1], index: 4, kind: input, shape index: {}]
  %s5 = inlined_call_operand.vmem [shape: f32[2,4,256], index: 5, kind: input, shape index: {}]
  %s6 = inlined_call_operand.vmem [shape: f32[2,4,256], index: 6, kind: output, shape index: {}]
  %s7 = sld [smem:[#allocation0]]
  $region57: #{rgpu_forward.17} parent=0
    _
  %s9 = ssub.s32 1, %s7
  %s10 = scalar_select 0, %s9, %s7
  loop: start=0, step=1, limit=4
  $region2: #{rgpu_forward.17} parent=0 // loop_pre_header
    _
  $region3: #{rgpu_forward.17} parent=0 // loop_header
    %s12 = sphi 0, %s16
    %p13 = scmp.ge.s32.totalorder %s12, 4
    %s19 = sphi 0, %s31
    %s20 = sphi 0, %s27
    %s21 = sphi 0, %s19
    %s22 = sphi 0, %s20
    %s23 = sphi 0, %s21
    %s24 = sphi 0, %s22
    %s36 = sphi 0, %s38
    %s39 = sphi 0, %s36
    %s40 = sphi 0, %s39
    %s56 = sphi 0, %s40
    %s60 = sphi 0, %s60
    %s62 = sphi 0, %s60
    %s63 = sphi 0, %s62
    %s77 = sphi 0, %s63
    %s81 = sphi 0, %s81
    %s83 = sphi 0, %s81
    %s84 = sphi 0, %s83
    %s98 = sphi 0, %s84
    %s102 = sphi 0, %s102
    %s104 = sphi 0, %s102
    %s105 = sphi 0, %s104
    %s119 = sphi 0, %s105
    %s125 = sphi 0, %s127
    %s128 = sphi 0, %s125
    %s129 = sphi 0, %s128
    %s145 = sphi 0, %s129
    %s153 = sphi 0, %s155
    %s156 = sphi 0, %s153
    %s157 = sphi 0, %s156
    %s173 = sphi 0, %s157
    %s181 = sphi 0, %s183
    %s184 = sphi 0, %s181
    %s185 = sphi 0, %s184
    %s201 = sphi 0, %s185
  $region4: #{rgpu_forward.17} parent=0 // loop_header_branch
    %15 = sbr.rel (%p13) target = $region8
  $region5: #{rgpu_forward.17} parent=0 // loop_body
    %s17 = ssub.s32 %s12, 1
    %s18 = ssub.s32 %s12, 2
    %s25 = sadd.s32 1, %s20
    %p26 = scmp.ge.s32.totalorder %s25, 1
    %s27 = scalar_select %p26, 0, %s25
    %s28 = sadd.s32 1, %s19
    %s29 = scalar_select %p26, %s28, %s19
    %p30 = scmp.ge.s32.totalorder %s29, 2
    %s31 = scalar_select %p30, 0, %s29
    %s32 = ssub.s32 %s19, %s31
    %s33 = ssub.s32 %s20, %s27
    %s34 = sor.u32 %s32, %s33
    %p35 = scmp.eq.s32.totalorder %s34, 0
    %s37 = sadd.s32 %s36, 1
    %s38 = scalar_select %p35, %s36, %s37
    %p41 = pneg %p35
    %p42 = scmp.eq.s32.totalorder %s12, 1
    %p43 = por %p41, %p42
    %p44 = scmp.ne.s32.totalorder %s36, %s39
    %p45 = scmp.eq.s32.totalorder %s12, 0
    %p46 = por %p44, %p45
    %p47 = scmp.ne.s32.totalorder %s36, %s39
    %p48 = scmp.eq.s32.totalorder %s17, 1
    %p49 = por %p47, %p48
    %p50 = scmp.ne.s32.totalorder %s39, %s40
    %p51 = scmp.eq.s32.totalorder %s17, 0
    %p52 = por %p50, %p51
    %p53 = scmp.ne.s32.totalorder %s39, %s40
    %p54 = scmp.eq.s32.totalorder %s18, 1
    %p55 = por %p53, %p54
    %p57 = scmp.ne.s32.totalorder %s40, %s56
    %p58 = scmp.eq.s32.totalorder %s18, 0
    %p59 = por %p57, %p58
    %s61 = sadd.s32 %s60, 1
    %p64 = scmp.eq.s32.totalorder %s12, 1
    %p65 = scmp.ne.s32.totalorder %s60, %s62
    %p66 = scmp.eq.s32.totalorder %s12, 0
    %p67 = por %p65, %p66
    %p68 = scmp.ne.s32.totalorder %s60, %s62
    %p69 = scmp.eq.s32.totalorder %s17, 1
    %p70 = por %p68, %p69
    %p71 = scmp.ne.s32.totalorder %s62, %s63
    %p72 = scmp.eq.s32.totalorder %s17, 0
    %p73 = por %p71, %p72
    %p74 = scmp.ne.s32.totalorder %s62, %s63
    %p75 = scmp.eq.s32.totalorder %s18, 1
    %p76 = por %p74, %p75
    %p78 = scmp.ne.s32.totalorder %s63, %s77
    %p79 = scmp.eq.s32.totalorder %s18, 0
    %p80 = por %p78, %p79
    %s82 = sadd.s32 %s81, 1
    %p85 = scmp.eq.s32.totalorder %s12, 1
    %p86 = scmp.ne.s32.totalorder %s81, %s83
    %p87 = scmp.eq.s32.totalorder %s12, 0
    %p88 = por %p86, %p87
    %p89 = scmp.ne.s32.totalorder %s81, %s83
    %p90 = scmp.eq.s32.totalorder %s17, 1
    %p91 = por %p89, %p90
    %p92 = scmp.ne.s32.totalorder %s83, %s84
    %p93 = scmp.eq.s32.totalorder %s17, 0
    %p94 = por %p92, %p93
    %p95 = scmp.ne.s32.totalorder %s83, %s84
    %p96 = scmp.eq.s32.totalorder %s18, 1
    %p97 = por %p95, %p96
    %p99 = scmp.ne.s32.totalorder %s84, %s98
    %p100 = scmp.eq.s32.totalorder %s18, 0
    %p101 = por %p99, %p100
    %s103 = sadd.s32 %s102, 1
    %p106 = scmp.eq.s32.totalorder %s12, 1
    %p107 = scmp.ne.s32.totalorder %s102, %s104
    %p108 = scmp.eq.s32.totalorder %s12, 0
    %p109 = por %p107, %p108
    %p110 = scmp.ne.s32.totalorder %s102, %s104
    %p111 = scmp.eq.s32.totalorder %s17, 1
    %p112 = por %p110, %p111
    %p113 = scmp.ne.s32.totalorder %s104, %s105
    %p114 = scmp.eq.s32.totalorder %s17, 0
    %p115 = por %p113, %p114
    %p116 = scmp.ne.s32.totalorder %s104, %s105
    %p117 = scmp.eq.s32.totalorder %s18, 1
    %p118 = por %p116, %p117
    %p120 = scmp.ne.s32.totalorder %s105, %s119
    %p121 = scmp.eq.s32.totalorder %s18, 0
    %p122 = por %p120, %p121
    %s123 = ssub.s32 %s19, %s31
    %p124 = scmp.eq.s32.totalorder %s123, 0
    %s126 = sadd.s32 %s125, 1
    %s127 = scalar_select %p124, %s125, %s126
    %p130 = pneg %p124
    %p131 = scmp.eq.s32.totalorder %s12, 1
    %p132 = por %p130, %p131
    %p133 = scmp.ne.s32.totalorder %s125, %s128
    %p134 = scmp.eq.s32.totalorder %s12, 0
    %p135 = por %p133, %p134
    %p136 = scmp.ne.s32.totalorder %s125, %s128
    %p137 = scmp.eq.s32.totalorder %s17, 1
    %p138 = por %p136, %p137
    %p139 = scmp.ne.s32.totalorder %s128, %s129
    %p140 = scmp.eq.s32.totalorder %s17, 0
    %p141 = por %p139, %p140
    %p142 = scmp.ne.s32.totalorder %s128, %s129
    %p143 = scmp.eq.s32.totalorder %s18, 1
    %p144 = por %p142, %p143
    %p146 = scmp.ne.s32.totalorder %s129, %s145
    %p147 = scmp.eq.s32.totalorder %s18, 0
    %p148 = por %p146, %p147
    %s149 = ssub.s32 %s19, %s31
    %s150 = ssub.s32 %s20, %s27
    %s151 = sor.u32 %s149, %s150
    %p152 = scmp.eq.s32.totalorder %s151, 0
    %s154 = sadd.s32 %s153, 1
    %s155 = scalar_select %p152, %s153, %s154
    %p158 = pneg %p152
    %p159 = scmp.eq.s32.totalorder %s12, 1
    %p160 = por %p158, %p159
    %p161 = scmp.ne.s32.totalorder %s153, %s156
    %p162 = scmp.eq.s32.totalorder %s12, 0
    %p163 = por %p161, %p162
    %p164 = scmp.ne.s32.totalorder %s153, %s156
    %p165 = scmp.eq.s32.totalorder %s17, 1
    %p166 = por %p164, %p165
    %p167 = scmp.ne.s32.totalorder %s156, %s157
    %p168 = scmp.eq.s32.totalorder %s17, 0
    %p169 = por %p167, %p168
    %p170 = scmp.ne.s32.totalorder %s156, %s157
    %p171 = scmp.eq.s32.totalorder %s18, 1
    %p172 = por %p170, %p171
    %p174 = scmp.ne.s32.totalorder %s157, %s173
    %p175 = scmp.eq.s32.totalorder %s18, 0
    %p176 = por %p174, %p175
    %s177 = ssub.s32 %s19, %s31
    %s178 = ssub.s32 %s20, %s27
    %s179 = sor.u32 %s177, %s178
    %p180 = scmp.eq.s32.totalorder %s179, 0
    %s182 = sadd.s32 %s181, 1
    %s183 = scalar_select %p180, %s181, %s182
    %p186 = pneg %p180
    %p187 = scmp.eq.s32.totalorder %s12, 1
    %p188 = por %p186, %p187
    %p189 = scmp.ne.s32.totalorder %s181, %s184
    %p190 = scmp.eq.s32.totalorder %s12, 0
    %p191 = por %p189, %p190
    %p192 = scmp.ne.s32.totalorder %s181, %s184
    %p193 = scmp.eq.s32.totalorder %s17, 1
    %p194 = por %p192, %p193
    %p195 = scmp.ne.s32.totalorder %s184, %s185
    %p196 = scmp.eq.s32.totalorder %s17, 0
    %p197 = por %p195, %p196
    %p198 = scmp.ne.s32.totalorder %s184, %s185
    %p199 = scmp.eq.s32.totalorder %s18, 1
    %p200 = por %p198, %p199
    %p202 = scmp.ne.s32.totalorder %s185, %s201
    %p203 = scmp.eq.s32.totalorder %s18, 0
    %p204 = por %p202, %p203
    %p205 = scmp.le.s32.totalorder 1, %s12
    %p206 = scmp.lt.s32.totalorder %s12, 3
    %p207 = pnand %p205, %p206
    %p208 = pneg %p207
    // Predicated region
    $region9: #{rgpu_forward.17} parent=5 // pred_check
      _
    $region10: #{rgpu_forward.17} parent=5 // pred_check_branch
      %210 = sbr.rel (%p207) target = $region12
    $region11: #{rgpu_forward.17} parent=5 // pred_region
      %s211 = ssub.s32 %s12, 1
      // Predicated region
      $region13: #{rgpu_forward.17} parent=11 // pred_check
        %p212 = pneg %p73
      $region14: #{rgpu_forward.17} parent=11 // pred_check_branch
        %214 = sbr.rel (%p212) target = $region16
      $region15: #{rgpu_forward.17} parent=11 // pred_region
        _
      $region16: #{rgpu_forward.17} parent=11 // pred_fallthru
        _
      // Predicated region
      $region17: #{rgpu_forward.17} parent=11 // pred_check
        %p215 = pneg %p94
      $region18: #{rgpu_forward.17} parent=11 // pred_check_branch
        %217 = sbr.rel (%p215) target = $region20
      $region19: #{rgpu_forward.17} parent=11 // pred_region
        _
      $region20: #{rgpu_forward.17} parent=11 // pred_fallthru
        _
      // Predicated region
      $region21: #{rgpu_forward.17} parent=11 // pred_check
        %p218 = pneg %p115
      $region22: #{rgpu_forward.17} parent=11 // pred_check_branch
        %220 = sbr.rel (%p218) target = $region24
      $region23: #{rgpu_forward.17} parent=11 // pred_region
        _
      $region24: #{rgpu_forward.17} parent=11 // pred_fallthru
        _
    $region12: #{rgpu_forward.17} parent=5 // pred_fallthru
      _
    %p221 = scmp.lt.s32.totalorder %s12, 2
    // Predicated region
    $region25: #{rgpu_forward.17} parent=5 // pred_check
      %p222 = pneg %p221
    $region26: #{rgpu_forward.17} parent=5 // pred_check_branch
      %224 = sbr.rel (%p222) target = $region28
    $region27: #{rgpu_forward.17} parent=5 // pred_region
      // Predicated region
      $region29: #{rgpu_forward.17} parent=27 // pred_check
        %p225 = pneg %p46
      $region30: #{rgpu_forward.17} parent=27 // pred_check_branch
        %227 = sbr.rel (%p225) target = $region32
      $region31: #{rgpu_forward.17} parent=27 // pred_region
        %s228 = smul.u32 2, %s20
        %p229 = scmp.lt.s32.totalorder %s19, 1
        %s230 = scalar_select %p229, %s19, 1
        %p231 = scmp.lt.s32.totalorder %s228, 1
        %s232 = scalar_select %p231, %s228, 1
        %s233 = smul.addr %s230, 28
        %s234 = sadd.s32 %s232, %s233
        %s235 = smul.addr %s234, 8
        %s236 = scalar_lea.vmem %s0, %s235
        %s237 = smul.u32 2, %s20
      $region32: #{rgpu_forward.17} parent=27 // pred_fallthru
        _
      // Predicated region
      $region33: #{rgpu_forward.17} parent=27 // pred_check
        %p238 = pneg %p135
      $region34: #{rgpu_forward.17} parent=27 // pred_check_branch
        %240 = sbr.rel (%p238) target = $region36
      $region35: #{rgpu_forward.17} parent=27 // pred_region
        %p241 = scmp.lt.s32.totalorder %s19, 1
        %s242 = scalar_select %p241, %s19, 1
        %s243 = smul.addr %s242, 14
        %s244 = smul.addr %s243, 8
        %s245 = scalar_lea.vmem %s4, %s244
      $region36: #{rgpu_forward.17} parent=27 // pred_fallthru
        _
      // Predicated region
      $region37: #{rgpu_forward.17} parent=27 // pred_check
        %p246 = pneg %p163
      $region38: #{rgpu_forward.17} parent=27 // pred_check_branch
        %248 = sbr.rel (%p246) target = $region40
      $region39: #{rgpu_forward.17} parent=27 // pred_region
        %s249 = smul.u32 2, %s20
        %p250 = scmp.lt.s32.totalorder %s19, 1
        %s251 = scalar_select %p250, %s19, 1
        %p252 = scmp.lt.s32.totalorder %s249, 1
        %s253 = scalar_select %p252, %s249, 1
        %s254 = smul.addr %s251, 2
        %s255 = sadd.s32 %s253, %s254
        %s256 = smul.addr %s255, 4
        %s257 = scalar_lea.vmem %s5, %s256
        %s258 = smul.u32 2, %s20
      $region40: #{rgpu_forward.17} parent=27 // pred_fallthru
        _
    $region28: #{rgpu_forward.17} parent=5 // pred_fallthru
      _
    %p259 = scmp.le.s32.totalorder 1, %s12
    %p260 = scmp.lt.s32.totalorder %s12, 3
    %p261 = pnand %p259, %p260
    %p262 = pneg %p261
    // Predicated region
    $region41: #{rgpu_forward.17} parent=5 // pred_check
      _
    $region42: #{rgpu_forward.17} parent=5 // pred_check_branch
      %264 = sbr.rel (%p261) target = $region44
    $region43: #{rgpu_forward.17} parent=5 // pred_region
      %s265 = ssub.s32 %s12, 1
      %s266 = smul.u32 2, %s22
      %p267 = scmp.lt.s32.totalorder %s21, 1
      %s268 = scalar_select %p267, %s21, 1
      %p269 = scmp.lt.s32.totalorder %s266, 1
      %s270 = scalar_select %p269, %s266, 1
      %s271 = smul.addr %s268, 28
      %s272 = sadd.s32 %s270, %s271
      %s273 = smul.addr %s272, 8
      %s274 = scalar_lea.vmem %s0, %s273
      %p275 = pneg %p52
      %p276 = pneg %p49
      %p277 = pneg %p73
      %p278 = pneg %p70
      %p279 = pneg %p94
      %p280 = pneg %p91
      %p281 = pneg %p115
      %p282 = pneg %p112
      %p283 = scmp.lt.s32.totalorder %s21, 1
      %s284 = scalar_select %p283, %s21, 1
      %s285 = smul.addr %s284, 14
      %s286 = smul.addr %s285, 8
      %s287 = scalar_lea.vmem %s4, %s286
      %p288 = pneg %p141
      %p289 = pneg %p138
      %s290 = smul.u32 2, %s22
      %p291 = scmp.lt.s32.totalorder %s21, 1
      %s292 = scalar_select %p291, %s21, 1
      %p293 = scmp.lt.s32.totalorder %s290, 1
      %s294 = scalar_select %p293, %s290, 1
      %s295 = smul.addr %s292, 2
      %s296 = sadd.s32 %s294, %s295
      %s297 = smul.addr %s296, 4
      %s298 = scalar_lea.vmem %s5, %s297
      %p299 = pneg %p169
      %p300 = pneg %p166
      %p301 = pneg %p197
      %p302 = pneg %p194
      %s303 = smul.u32 2, %s22
      %p304 = scmp.lt.s32.totalorder %s21, 1
      %s305 = scalar_select %p304, %s21, 1
      %p306 = scmp.lt.s32.totalorder %s303, 1
      %s307 = scalar_select %p306, %s303, 1
      %s308 = smul.addr %s305, 2
      %s309 = sadd.s32 %s307, %s308
      %s310 = smul.addr %s309, 4
      %s311 = scalar_lea.vmem %s6, %s310
      %s312 = smul.u32 2, %s22
      %p313 = scmp.lt.s32.totalorder %s21, 1
      %s314 = scalar_select %p313, %s21, 1
      %p315 = scmp.lt.s32.totalorder %s312, 1
      %s316 = scalar_select %p315, %s312, 1
      %s317 = smul.addr %s314, 28
      %s318 = sadd.s32 %s316, %s317
      %s319 = smul.addr %s318, 8
      %s320 = scalar_lea.vmem %s0, %s319
      %s321 = smul.u32 2, %s22
      %p322 = scmp.lt.s32.totalorder %s21, 1
      %s323 = scalar_select %p322, %s21, 1
      %s324 = smul.addr %s323, 14
      %s325 = smul.addr %s324, 8
      %s326 = scalar_lea.vmem %s4, %s325
      %s327 = smul.u32 2, %s22
      %p328 = scmp.lt.s32.totalorder %s21, 1
      %s329 = scalar_select %p328, %s21, 1
      %p330 = scmp.lt.s32.totalorder %s327, 1
      %s331 = scalar_select %p330, %s327, 1
      %s332 = smul.addr %s329, 2
      %s333 = sadd.s32 %s331, %s332
      %s334 = smul.addr %s333, 4
      %s335 = scalar_lea.vmem %s5, %s334
      %s336 = smul.u32 2, %s22
      %s337 = smul.u32 2, %s22
      %p338 = scmp.lt.s32.totalorder %s21, 1
      %s339 = scalar_select %p338, %s21, 1
      %p340 = scmp.lt.s32.totalorder %s337, 1
      %s341 = scalar_select %p340, %s337, 1
      %s342 = smul.addr %s339, 2
      %s343 = sadd.s32 %s341, %s342
      %s344 = smul.addr %s343, 4
      %s345 = scalar_lea.vmem %s6, %s344
      %s346 = smul.u32 2, %s22
      %v347 = vld [vmem:[%s320] sm:$0xff]
      %v348 = vld [vmem:[%s320 + $0x8] sm:$0xff]
      %v349 = vld [vmem:[%s320 + $0x10] sm:$0xff]
      %v350 = vld [vmem:[%s320 + $0x18] sm:$0xff]
      %v351 = vld [vmem:[%s320 + $0x20] sm:$0xff]
      %v352 = vld [vmem:[%s320 + $0x28] sm:$0xff]
      %v353 = vld [vmem:[%s320 + $0x30] sm:$0xff]
      %v354 = vld [vmem:[%s320 + $0x38] sm:$0xff]
      %v355 = vld [vmem:[%s320 + $0x40] sm:$0xff]
      %v356 = vld [vmem:[%s320 + $0x48] sm:$0xff]
      %v357 = vld [vmem:[%s320 + $0x50] sm:$0xff]
      %v358 = vld [vmem:[%s320 + $0x58] sm:$0xff]
      %v359 = vld [vmem:[%s320 + $0x60] sm:$0xff]
      %v360 = vld [vmem:[%s320 + $0x68] sm:$0xff]
      %v361 = vld [vmem:[%s320 + $0x70] sm:$0xff]
      %v362 = vld [vmem:[%s320 + $0x78] sm:$0xff]
      %v363 = vld [vmem:[%s320 + $0x80] sm:$0xff]
      %v364 = vld [vmem:[%s320 + $0x88] sm:$0xff]
      %v365 = vld [vmem:[%s320 + $0x90] sm:$0xff]
      %v366 = vld [vmem:[%s320 + $0x98] sm:$0xff]
      %v367 = vld [vmem:[%s320 + $0xa0] sm:$0xff]
      %v368 = vld [vmem:[%s320 + $0xa8] sm:$0xff]
      %v369 = vld [vmem:[%s320 + $0xb0] sm:$0xff]
      %v370 = vld [vmem:[%s320 + $0xb8] sm:$0xff]
      %v371 = vld [vmem:[%s320 + $0xc0] sm:$0xff]
      %v372 = vld [vmem:[%s320 + $0xc8] sm:$0xff]
      %v373 = vld [vmem:[%s320 + $0xd0] sm:$0xf]
      %v374 = vld [vmem:[%s320 + $0xd8] sm:$0xf]
      %v375 = vld [vmem:[%s326] sm:$0xff]
      %v376 = vld [vmem:[%s326 + $0x8] sm:$0xff]
      %v377 = vld [vmem:[%s326 + $0x10] sm:$0xff]
      %v378 = vld [vmem:[%s326 + $0x18] sm:$0xff]
      %v379 = vld [vmem:[%s326 + $0x20] sm:$0xff]
      %v380 = vld [vmem:[%s326 + $0x28] sm:$0xff]
      %v381 = vld [vmem:[%s326 + $0x30] sm:$0xff]
      %v382 = vld [vmem:[%s326 + $0x38] sm:$0xff]
      %v383 = vld [vmem:[%s326 + $0x40] sm:$0xff]
      %v384 = vld [vmem:[%s326 + $0x48] sm:$0xff]
      %v385 = vld [vmem:[%s326 + $0x50] sm:$0xff]
      %v386 = vld [vmem:[%s326 + $0x58] sm:$0xff]
      %v387 = vld [vmem:[%s326 + $0x60] sm:$0xff]
      %v388 = vld [vmem:[%s326 + $0x68] sm:$0xf]
      %390 = vset.pattern.permute.xlu0 0
      %391 = vperm.xlu0 %390, %v375
      %v392 = vpop.permute.xlu0 %391
      %395 = vset.pattern.permute.xlu0 0
      %396 = vperm.xlu0 %395, %v376
      %v397 = vpop.permute.xlu0 %396
      %400 = vset.pattern.permute.xlu0 0
      %401 = vperm.xlu0 %400, %v377
      %v402 = vpop.permute.xlu0 %401
      %405 = vset.pattern.permute.xlu0 0
      %406 = vperm.xlu0 %405, %v378
      %v407 = vpop.permute.xlu0 %406
      %410 = vset.pattern.permute.xlu0 0
      %411 = vperm.xlu0 %410, %v379
      %v412 = vpop.permute.xlu0 %411
      %415 = vset.pattern.permute.xlu0 0
      %416 = vperm.xlu0 %415, %v380
      %v417 = vpop.permute.xlu0 %416
      %420 = vset.pattern.permute.xlu0 0
      %421 = vperm.xlu0 %420, %v381
      %v422 = vpop.permute.xlu0 %421
      %425 = vset.pattern.permute.xlu0 0
      %426 = vperm.xlu0 %425, %v382
      %v427 = vpop.permute.xlu0 %426
      %430 = vset.pattern.permute.xlu0 0
      %431 = vperm.xlu0 %430, %v383
      %v432 = vpop.permute.xlu0 %431
      %435 = vset.pattern.permute.xlu0 0
      %436 = vperm.xlu0 %435, %v384
      %v437 = vpop.permute.xlu0 %436
      %440 = vset.pattern.permute.xlu0 0
      %441 = vperm.xlu0 %440, %v385
      %v442 = vpop.permute.xlu0 %441
      %445 = vset.pattern.permute.xlu0 0
      %446 = vperm.xlu0 %445, %v386
      %v447 = vpop.permute.xlu0 %446
      %450 = vset.pattern.permute.xlu0 0
      %451 = vperm.xlu0 %450, %v387
      %v452 = vpop.permute.xlu0 %451
      %455 = vset.pattern.permute.xlu0 0
      %456 = vperm.xlu0 %455, %v388
      %v457 = vpop.permute.xlu0 %456
      %v459 = vmul.f32 %v347, %v392
      %v460 = vmul.f32 %v348, %v392
      %v461 = vmul.f32 %v349, %v397
      %v462 = vmul.f32 %v350, %v397
      %v463 = vmul.f32 %v351, %v402
      %v464 = vmul.f32 %v352, %v402
      %v465 = vmul.f32 %v353, %v407
      %v466 = vmul.f32 %v354, %v407
      %v467 = vmul.f32 %v355, %v412
      %v468 = vmul.f32 %v356, %v412
      %v469 = vmul.f32 %v357, %v417
      %v470 = vmul.f32 %v358, %v417
      %v471 = vmul.f32 %v359, %v422
      %v472 = vmul.f32 %v360, %v422
      %v473 = vmul.f32 %v361, %v427
      %v474 = vmul.f32 %v362, %v427
      %v475 = vmul.f32 %v363, %v432
      %v476 = vmul.f32 %v364, %v432
      %v477 = vmul.f32 %v365, %v437
      %v478 = vmul.f32 %v366, %v437
      %v479 = vmul.f32 %v367, %v442
      %v480 = vmul.f32 %v368, %v442
      %v481 = vmul.f32 %v369, %v447
      %v482 = vmul.f32 %v370, %v447
      %v483 = vmul.f32 %v371, %v452
      %v484 = vmul.f32 %v372, %v452
      %v485 = vmul.f32 %v373, %v457
      %v486 = vmul.f32 %v374, %v457
      %v487 = vld [vmem:[%s1] sm:$0xf]
      %vm488 = vcmask 883712
      %v490 = vsel %vm488, %v487, 0
      %vm492 = vcmask 1043456
      %v494 = vsel %vm492, %v485, 0
      %v497 = vsel %vm492, %v486, 0
      %499 = vmatpush.msra.mxu0 0.0
      %500 = vmatpush.msra.mxu0 0.0
      %501 = vmatpush.msra.mxu0 %v494
      %502 = vmatpush.msra.mxu0 %v483
      %503 = vmatpush.msra.mxu0 %v481
      %504 = vmatpush.msra.mxu0 %v479
      %505 = vmatpush.msra.mxu0 %v477
      %506 = vmatpush.msra.mxu0 %v475
      %507 = vmatpush.msra.mxu0 %v473
      %508 = vmatpush.msra.mxu0 %v471
      %509 = vmatpush.msra.mxu0 %v469
      %510 = vmatpush.msra.mxu0 %v467
      %511 = vmatpush.msra.mxu0 %v465
      %512 = vmatpush.msra.mxu0 %v463
      %513 = vmatpush.msra.mxu0 %v461
      %514 = vmatpush.msra.mxu0 %v459
      %515 = vmatmul.f32.gmra.mxu0 %v490
      %v516 = vpop.f32.mrf.mxu0
      %v517 = vadd.f32 0.0, %v516
      %518 = vdwg.mxu0
      %519 = vmatpush.msra.mxu0 0.0
      %520 = vmatpush.msra.mxu0 0.0
      %521 = vmatpush.msra.mxu0 %v497
      %522 = vmatpush.msra.mxu0 %v484
      %523 = vmatpush.msra.mxu0 %v482
      %524 = vmatpush.msra.mxu0 %v480
      %525 = vmatpush.msra.mxu0 %v478
      %526 = vmatpush.msra.mxu0 %v476
      %527 = vmatpush.msra.mxu0 %v474
      %528 = vmatpush.msra.mxu0 %v472
      %529 = vmatpush.msra.mxu0 %v470
      %530 = vmatpush.msra.mxu0 %v468
      %531 = vmatpush.msra.mxu0 %v466
      %532 = vmatpush.msra.mxu0 %v464
      %533 = vmatpush.msra.mxu0 %v462
      %534 = vmatpush.msra.mxu0 %v460
      %535 = vmatmul.f32.gmra.mxu0 %v490
      %v536 = vpop.f32.mrf.mxu0
      %v537 = vadd.f32 0.0, %v536
      %538 = vdwg.mxu0
      %v539 = vld [vmem:[%s2] sm:$0xf]
      %541 = vset.pattern.permute.xlu0 0
      %542 = vperm.xlu0 %541, %v539
      %v543 = vpop.permute.xlu0 %542
      %v545 = vmul.f32 %v517, %v543
      %v546 = vmul.f32 %v537, %v543
      %v547 = vld [vmem:[%s3] sm:$0xf]
      %549 = vset.pattern.permute.xlu0 0
      %550 = vperm.xlu0 %549, %v547
      %v551 = vpop.permute.xlu0 %550
      %v553 = vadd.f32 %v545, %v551
      %v554 = vadd.f32 %v546, %v551
      %v555 = vld [vmem:[%s335] sm:$0xff]
      %557 = vst [vmem:[#allocation1] ss:$2 sm:$0xff] %v555
      %v558 = vld.sshfl [vmem:[#allocation1] sm:$0xff pattern:$0x75316420]
      %v559 = vld.sshfl [vmem:[#allocation1 + $0x8] sm:$0xff pattern:$0x75316420]
      %v562 = vadd.f32 %v553, %v558
      %v563 = vadd.f32 %v554, %v559
      %v564 = vmax.f32 %v562, 0.0
      %v565 = vmax.f32 %v563, 0.0
      %v568 = vrot.slane %v565, 4
      %v569 = vsel %vm492, %v564, %v568
      %571 = vst [vmem:[%s345] sm:$0xff] %v569
      %s572 = smul.u32 2, %s22
      %p573 = scmp.lt.s32.totalorder %s21, 1
      %s574 = scalar_select %p573, %s21, 1
      %p575 = scmp.lt.s32.totalorder %s572, 1
      %s576 = scalar_select %p575, %s572, 1
      %s577 = smul.addr %s574, 2
      %s578 = sadd.s32 %s576, %s577
      %s579 = smul.addr %s578, 4
      %s580 = scalar_lea.vmem %s6, %s579
      // Predicated region
      $region45: #{rgpu_forward.17} parent=43 // pred_check
        %p581 = pneg %p194
      $region46: #{rgpu_forward.17} parent=43 // pred_check_branch
        %583 = sbr.rel (%p581) target = $region48
      $region47: #{rgpu_forward.17} parent=43 // pred_region
        %s584 = smul.u32 2, %s22
      $region48: #{rgpu_forward.17} parent=43 // pred_fallthru
        _
    $region44: #{rgpu_forward.17} parent=5 // pred_fallthru
      _
    %p585 = scmp.le.s32.totalorder 2, %s12
    // Predicated region
    $region49: #{rgpu_forward.17} parent=5 // pred_check
      %p586 = pneg %p585
    $region50: #{rgpu_forward.17} parent=5 // pred_check_branch
      %588 = sbr.rel (%p586) target = $region52
    $region51: #{rgpu_forward.17} parent=5 // pred_region
      %s589 = ssub.s32 %s12, 2
      // Predicated region
      $region53: #{rgpu_forward.17} parent=51 // pred_check
        %p590 = pneg %p200
      $region54: #{rgpu_forward.17} parent=51 // pred_check_branch
        %592 = sbr.rel (%p590) target = $region56
      $region55: #{rgpu_forward.17} parent=51 // pred_region
        %s593 = smul.u32 2, %s24
        %p594 = scmp.lt.s32.totalorder %s23, 1
        %s595 = scalar_select %p594, %s23, 1
        %p596 = scmp.lt.s32.totalorder %s593, 1
        %s597 = scalar_select %p596, %s593, 1
        %s598 = smul.addr %s595, 2
        %s599 = sadd.s32 %s597, %s598
        %s600 = smul.addr %s599, 4
        %s601 = scalar_lea.vmem %s6, %s600
      $region56: #{rgpu_forward.17} parent=51 // pred_fallthru
        _
    $region52: #{rgpu_forward.17} parent=5 // pred_fallthru
      _
  $region6: #{rgpu_forward.17} parent=0 // loop_footer
    %s16 = sadd.s32 1, %s12
  $region7: #{rgpu_forward.17} parent=0 // loop_footer_branch
    %11 = sbr.rel target = $region3
  $region8: #{rgpu_forward.17} parent=0 // loop_exit
    _

</llo_original>
